<compile_context>
chip_gen: v5e
topology: v5e:2x2
jax: 0.10.0
libtpu: 0.0.40
codegen_flags: <defaults>
</compile_context>

<pallas_src>
import math
import functools

import jax
import jax.numpy as jnp
from jax import lax
from jax.experimental import pallas as pl
from jax.experimental.pallas import tpu as pltpu

HEAD_DIM = 64
LN_EPS = 1e-5


def _layernorm(x, w, b):
    # x: (R, D) f32, w/b: (1, D) f32
    mu = jnp.mean(x, axis=-1, keepdims=True)
    xc = x - mu
    var = jnp.mean(xc * xc, axis=-1, keepdims=True)
    return xc * lax.rsqrt(var + LN_EPS) * w + b


def self_attention_kernel(x_ref, pm_ref,
                          norm_w_ref, norm_b_ref,
                          qw_ref, qb_ref, kw_ref, kb_ref, vw_ref, vb_ref,
                          qn_w_ref, qn_b_ref, kn_w_ref, kn_b_ref,
                          ow_ref, ob_ref,
                          o_ref, *, n_heads):
    B, L, D = x_ref.shape            # one batch tile per grid step
    H = n_heads
    E = D // H
    scale = 1.0 / math.sqrt(E)
    R = B * L

    # ---- LayerNorm + projections on all B*L rows at once (tall MXU matmuls) ----
    x = x_ref[...].reshape(R, D).astype(jnp.float32)
    xn = _layernorm(x, norm_w_ref[...], norm_b_ref[...])
    xn_bf = xn.astype(jnp.bfloat16)          # bf16 MXU inputs, f32 accumulation

    # Fold the softmax scale into the q_norm affine params: cheapest place to
    # apply it (one (1, D) multiply per tile instead of per-head score scaling).
    q = _layernorm(
        jnp.dot(xn_bf, qw_ref[...], preferred_element_type=jnp.float32) + qb_ref[...],
        qn_w_ref[...] * scale, qn_b_ref[...] * scale)
    k = _layernorm(
        jnp.dot(xn_bf, kw_ref[...], preferred_element_type=jnp.float32) + kb_ref[...],
        kn_w_ref[...], kn_b_ref[...])
    v = jnp.dot(xn_bf, vw_ref[...], preferred_element_type=jnp.float32) + vb_ref[...]

    ow = ow_ref[...]                                         # (D, D) bf16
    ow_heads = [ow[h * E:(h + 1) * E, :] for h in range(H)]  # sublane slices
    ob = ob_ref[...]                                         # (1, D) f32

    # Loop-invariant diagonal (reference mask always keeps the diagonal).
    diag = (lax.broadcasted_iota(jnp.int32, (L, L), 0)
            == lax.broadcasted_iota(jnp.int32, (L, L), 1))
    neg_big = jnp.float32(-1e30)   # stands in for -inf; diagonal is always kept

    # ---- masked SDPA per (batch, head); fold heads straight into o_proj ----
    for b in range(B):                           # static unroll, b_tile small
        rows = slice(b * L, (b + 1) * L)
        pmb = pm_ref[b]                          # (1, L) f32 padding vector
        valid_col = pmb > 0.5                    # (1, L)
        valid_row = jnp.transpose(pmb) > 0.5     # (L, 1)
        keep = (valid_row & valid_col) | diag    # (L, L), built in-kernel

        out_b = jnp.zeros((L, D), jnp.float32)
        for h in range(H):                       # static unroll over heads
            cols = slice(h * E, (h + 1) * E)
            qh, kh, vh = q[rows, cols], k[rows, cols], v[rows, cols]
            s = lax.dot_general(qh, kh, (((1,), (1,)), ((), ())),
                                preferred_element_type=jnp.float32)
            s = jnp.where(keep, s, neg_big)
            m = jnp.max(s, axis=-1, keepdims=True)
            e = jnp.exp(s - m)
            p = e * pl.reciprocal(jnp.sum(e, axis=-1, keepdims=True), approx=True)
            pv = jnp.dot(p, vh, preferred_element_type=jnp.float32)   # (L, E)
            # attn @ o_w == sum_h pv_h @ o_w[h*E:(h+1)*E]  -> no concatenate,
            # each head's vregs retire before the next head.
            out_b = out_b + jnp.dot(pv.astype(jnp.bfloat16), ow_heads[h],
                                    preferred_element_type=jnp.float32)
        o_ref[b] = (out_b + ob).astype(o_ref.dtype)


def _choose_batch_tile(n, l):
    """~256 rows per grid step to feed the MXU, but keep >=2 grid steps when
    possible (v7x megacore) and make the tile divide N exactly."""
    b = max(1, min(n, 256 // max(l, 1)))
    while n % b:
        b -= 1
    if n > 1 and n // b < 2:
        b = max(1, n // 2)
        while n % b:
            b -= 1
    return b


def self_attention(x, padding_mask, params, n_heads, b_tile=None):
    N, L, D = x.shape
    if b_tile is None:
        b_tile = _choose_batch_tile(N, L)
    assert N % b_tile == 0

    (norm_w, norm_b, qw, qb, kw, kb, vw, vb,
     qn_w, qn_b, kn_w, kn_b, ow, ob) = params

    # bf16 weights for the projection matmuls: halves weight DMA bytes and
    # doubles MXU throughput; biases / LN params stay f32.
    qw, kw, vw, ow = (w.astype(jnp.bfloat16) for w in (qw, kw, vw, ow))

    # Only the (N, L) padding vector crosses HBM; the (L, L) mask is in-kernel.
    pm = padding_mask.astype(jnp.float32).reshape(N, 1, L)

    wspec = pl.BlockSpec((D, D), lambda n: (0, 0))
    bspec = pl.BlockSpec((1, D), lambda n: (0, 0))
    # TODO(synk): on v7x with large D, mark the grid-invariant weight specs
    # single-buffered (pipeline_mode=pl.Buffered(1)) or hoist them to manual
    # DMA to halve weight VMEM; at D=128 the double-buffered copies are noise.

    kernel = functools.partial(self_attention_kernel, n_heads=n_heads)

    return pl.pallas_call(
        kernel,
        out_shape=jax.ShapeDtypeStruct((N, L, D), x.dtype),
        grid_spec=pltpu.PrefetchScalarGridSpec(
            num_scalar_prefetch=0,
            grid=(N // b_tile,),
            in_specs=[
                pl.BlockSpec((b_tile, L, D), lambda n: (n, 0, 0)),   # x
                pl.BlockSpec((b_tile, 1, L), lambda n: (n, 0, 0)),   # padding mask
                bspec, bspec,      # norm w/b
                wspec, bspec,      # q_proj
                wspec, bspec,      # k_proj
                wspec, bspec,      # v_proj
                bspec, bspec,      # q_norm
                bspec, bspec,      # k_norm
                wspec, bspec,      # o_proj
            ],
            out_specs=pl.BlockSpec((b_tile, L, D), lambda n: (n, 0, 0)),
        ),
        compiler_params=pltpu.CompilerParams(
            dimension_semantics=("parallel",)),
        # VMEM footprint is tiny at these shapes; raise vmem_limit_bytes only
        # if b_tile/L/D grow (v6e default scoped limit is 32 MiB).
    )(x, pm, norm_w, norm_b, qw, qb, kw, kb, vw, vb,
      qn_w, qn_b, kn_w, kn_b, ow, ob)


def reference(x, padding_mask, params, n_heads):
    (norm_w, norm_b, qw, qb, kw, kb, vw, vb,
     qn_w, qn_b, kn_w, kn_b, ow, ob) = params

    def ln(v, w, b):
        mu = v.mean(-1, keepdims=True)
        var = ((v - mu) ** 2).mean(-1, keepdims=True)
        return (v - mu) / jnp.sqrt(var + LN_EPS) * w + b

    N, L, D = x.shape
    E = D // n_heads
    xn = ln(x, norm_w, norm_b)
    q = ln(xn @ qw + qb, qn_w, qn_b)
    k = ln(xn @ kw + kb, kn_w, kn_b)
    v = xn @ vw + vb
    q = q.reshape(N, L, n_heads, E).transpose(0, 2, 1, 3)
    k = k.reshape(N, L, n_heads, E).transpose(0, 2, 1, 3)
    v = v.reshape(N, L, n_heads, E).transpose(0, 2, 1, 3)
    keep = jnp.maximum(padding_mask[:, None, :] * padding_mask[:, :, None],
                       jnp.eye(L)) > 0
    s = jnp.einsum('nhle,nhme->nhlm', q, k) / math.sqrt(E)
    s = jnp.where(keep[:, None], s, -jnp.inf)
    p = jax.nn.softmax(s, axis=-1)
    o = jnp.einsum('nhlm,nhme->nhle', p, v)
    o = o.transpose(0, 2, 1, 3).reshape(N, L, D)
    return o @ ow + ob


def _linear_init(key, d):
    kw, kb = jax.random.split(key)
    bound = 1.0 / math.sqrt(d)
    W = jax.random.uniform(kw, (d, d), jnp.float32, -bound, bound)   # (in, out)
    b = jax.random.uniform(kb, (1, d), jnp.float32, -bound, bound)
    return W, b


if __name__ == "__main__":
    N, L, D = 2, 8, 128          # batch, seq, d_model (d_model // 64 = 2 heads)
    n_heads = D // HEAD_DIM

    key = jax.random.PRNGKey(0)
    kx, kp, kq, kk, kv, ko = jax.random.split(key, 6)

    x = jax.random.normal(kx, (N, L, D), jnp.float32)
    padding_mask = (jax.random.uniform(kp, (N, L)) > 0.25).astype(jnp.float32)

    qw, qb = _linear_init(kq, D)
    kw, kb = _linear_init(kk, D)
    vw, vb = _linear_init(kv, D)
    ow, ob = _linear_init(ko, D)
    ones = jnp.ones((1, D), jnp.float32)    # LayerNorm default weight
    zeros = jnp.zeros((1, D), jnp.float32)  # LayerNorm default bias
    params = (ones, zeros, qw, qb, kw, kb, vw, vb,
              ones, zeros, ones, zeros, ow, ob)

    out = self_attention(x, padding_mask, params, n_heads)
    jax.block_until_ready(out)

    ref = reference(x, padding_mask, params, n_heads)
    # bf16 MXU inputs + approx reciprocal => looser tolerance than pure-f32.
    err = float(jnp.max(jnp.abs(out - ref)))
    assert jnp.allclose(out, ref, atol=2e-2, rtol=2e-2), err

    print("KERNEL_OK")
</pallas_src>

<mosaic_0001>
module attributes {stable_mosaic.version = 11 : i64} {
  func.func @self_attention_kernel(%arg0: i32, %arg1: memref<1x8x128xf32, #tpu.memory_space<vmem>>, %arg2: memref<1x1x8xf32, #tpu.memory_space<vmem>>, %arg3: memref<1x128xf32, #tpu.memory_space<vmem>>, %arg4: memref<1x128xf32, #tpu.memory_space<vmem>>, %arg5: memref<128x128xbf16, #tpu.memory_space<vmem>>, %arg6: memref<1x128xf32, #tpu.memory_space<vmem>>, %arg7: memref<128x128xbf16, #tpu.memory_space<vmem>>, %arg8: memref<1x128xf32, #tpu.memory_space<vmem>>, %arg9: memref<128x128xbf16, #tpu.memory_space<vmem>>, %arg10: memref<1x128xf32, #tpu.memory_space<vmem>>, %arg11: memref<1x128xf32, #tpu.memory_space<vmem>>, %arg12: memref<1x128xf32, #tpu.memory_space<vmem>>, %arg13: memref<1x128xf32, #tpu.memory_space<vmem>>, %arg14: memref<1x128xf32, #tpu.memory_space<vmem>>, %arg15: memref<128x128xbf16, #tpu.memory_space<vmem>>, %arg16: memref<1x128xf32, #tpu.memory_space<vmem>>, %arg17: memref<1x8x128xf32, #tpu.memory_space<vmem>>) attributes {dimension_semantics = [#tpu.dimension_semantics<parallel>], iteration_bounds = array<i64: 2>, scalar_prefetch = 0 : i64, scratch_operands = 0 : i64, tpu.core_type = #tpu.core_type<tc>, window_params = [{transform_indices = @transform_0, window_bounds = array<i64: 1, 8, 128>}, {transform_indices = @transform_1, window_bounds = array<i64: 1, 1, 8>}, {pipeline_mode = #tpu.pipeline_mode<synchronous>, transform_indices = @transform_2, window_bounds = array<i64: 1, 128>}, {pipeline_mode = #tpu.pipeline_mode<synchronous>, transform_indices = @transform_3, window_bounds = array<i64: 1, 128>}, {pipeline_mode = #tpu.pipeline_mode<synchronous>, transform_indices = @transform_4, window_bounds = array<i64: 128, 128>}, {pipeline_mode = #tpu.pipeline_mode<synchronous>, transform_indices = @transform_5, window_bounds = array<i64: 1, 128>}, {pipeline_mode = #tpu.pipeline_mode<synchronous>, transform_indices = @transform_6, window_bounds = array<i64: 128, 128>}, {pipeline_mode = #tpu.pipeline_mode<synchronous>, transform_indices = @transform_7, window_bounds = array<i64: 1, 128>}, {pipeline_mode = #tpu.pipeline_mode<synchronous>, transform_indices = @transform_8, window_bounds = array<i64: 128, 128>}, {pipeline_mode = #tpu.pipeline_mode<synchronous>, transform_indices = @transform_9, window_bounds = array<i64: 1, 128>}, {pipeline_mode = #tpu.pipeline_mode<synchronous>, transform_indices = @transform_10, window_bounds = array<i64: 1, 128>}, {pipeline_mode = #tpu.pipeline_mode<synchronous>, transform_indices = @transform_11, window_bounds = array<i64: 1, 128>}, {pipeline_mode = #tpu.pipeline_mode<synchronous>, transform_indices = @transform_12, window_bounds = array<i64: 1, 128>}, {pipeline_mode = #tpu.pipeline_mode<synchronous>, transform_indices = @transform_13, window_bounds = array<i64: 1, 128>}, {pipeline_mode = #tpu.pipeline_mode<synchronous>, transform_indices = @transform_14, window_bounds = array<i64: 128, 128>}, {pipeline_mode = #tpu.pipeline_mode<synchronous>, transform_indices = @transform_15, window_bounds = array<i64: 1, 128>}, {transform_indices = @transform_16, window_bounds = array<i64: 1, 8, 128>}]} {
    %c0 = arith.constant 0 : index
    %c0_0 = arith.constant 0 : index
    %c0_1 = arith.constant 0 : index
    %0 = vector.load %arg1[%c0, %c0_0, %c0_1] : memref<1x8x128xf32, #tpu.memory_space<vmem>>, vector<1x8x128xf32>
    %1 = vector.shape_cast %0 : vector<1x8x128xf32> to vector<8x128xf32>
    %c0_2 = arith.constant 0 : index
    %c0_3 = arith.constant 0 : index
    %2 = vector.load %arg3[%c0_2, %c0_3] : memref<1x128xf32, #tpu.memory_space<vmem>>, vector<1x128xf32>
    %c0_4 = arith.constant 0 : index
    %c0_5 = arith.constant 0 : index
    %3 = vector.load %arg4[%c0_4, %c0_5] : memref<1x128xf32, #tpu.memory_space<vmem>>, vector<1x128xf32>
    %cst = arith.constant dense<0.000000e+00> : vector<8xf32>
    %4 = vector.multi_reduction <add>, %1, %cst [1] : vector<8x128xf32> to vector<8xf32>
    %5 = vector.shape_cast %4 : vector<8xf32> to vector<8x1xf32>
    %cst_6 = arith.constant 1.280000e+02 : f32
    %6 = vector.broadcast %cst_6 : f32 to vector<8x1xf32>
    %7 = arith.divf %5, %6 : vector<8x1xf32>
    %8 = vector.broadcast %7 : vector<8x1xf32> to vector<8x128xf32>
    %9 = arith.subf %1, %8 : vector<8x128xf32>
    %10 = arith.mulf %9, %9 : vector<8x128xf32>
    %cst_7 = arith.constant dense<0.000000e+00> : vector<8xf32>
    %11 = vector.multi_reduction <add>, %10, %cst_7 [1] : vector<8x128xf32> to vector<8xf32>
    %12 = vector.shape_cast %11 : vector<8xf32> to vector<8x1xf32>
    %cst_8 = arith.constant 1.280000e+02 : f32
    %13 = vector.broadcast %cst_8 : f32 to vector<8x1xf32>
    %14 = arith.divf %12, %13 : vector<8x1xf32>
    %cst_9 = arith.constant 9.99999974E-6 : f32
    %15 = vector.broadcast %cst_9 : f32 to vector<8x1xf32>
    %16 = arith.addf %14, %15 : vector<8x1xf32>
    %17 = math.rsqrt %16 : vector<8x1xf32>
    %18 = vector.broadcast %17 : vector<8x1xf32> to vector<8x128xf32>
    %19 = arith.mulf %9, %18 : vector<8x128xf32>
    %20 = vector.broadcast %2 : vector<1x128xf32> to vector<8x128xf32>
    %21 = arith.mulf %19, %20 : vector<8x128xf32>
    %22 = vector.broadcast %3 : vector<1x128xf32> to vector<8x128xf32>
    %23 = arith.addf %21, %22 : vector<8x128xf32>
    %24 = arith.truncf %23 : vector<8x128xf32> to vector<8x128xbf16>
    %c0_10 = arith.constant 0 : index
    %c0_11 = arith.constant 0 : index
    %25 = vector.load %arg5[%c0_10, %c0_11] : memref<128x128xbf16, #tpu.memory_space<vmem>>, vector<128x128xbf16>
    %cst_12 = arith.constant dense<0.000000e+00> : vector<8x128xf32>
    %26 = tpu.matmul %24, %25, %cst_12 {dimension_numbers = #tpu.dot_dimension_numbers<[1], [0], [0], [1], [0, 0, 1, 1], [], []>} : vector<8x128xbf16>, vector<128x128xbf16>, vector<8x128xf32> -> vector<8x128xf32>
    %c0_13 = arith.constant 0 : index
    %c0_14 = arith.constant 0 : index
    %27 = vector.load %arg6[%c0_13, %c0_14] : memref<1x128xf32, #tpu.memory_space<vmem>>, vector<1x128xf32>
    %28 = vector.broadcast %27 : vector<1x128xf32> to vector<8x128xf32>
    %29 = arith.addf %26, %28 : vector<8x128xf32>
    %c0_15 = arith.constant 0 : index
    %c0_16 = arith.constant 0 : index
    %30 = vector.load %arg11[%c0_15, %c0_16] : memref<1x128xf32, #tpu.memory_space<vmem>>, vector<1x128xf32>
    %cst_17 = arith.constant 1.250000e-01 : f32
    %31 = vector.broadcast %cst_17 : f32 to vector<1x128xf32>
    %32 = arith.mulf %30, %31 : vector<1x128xf32>
    %c0_18 = arith.constant 0 : index
    %c0_19 = arith.constant 0 : index
    %33 = vector.load %arg12[%c0_18, %c0_19] : memref<1x128xf32, #tpu.memory_space<vmem>>, vector<1x128xf32>
    %cst_20 = arith.constant 1.250000e-01 : f32
    %34 = vector.broadcast %cst_20 : f32 to vector<1x128xf32>
    %35 = arith.mulf %33, %34 : vector<1x128xf32>
    %cst_21 = arith.constant dense<0.000000e+00> : vector<8xf32>
    %36 = vector.multi_reduction <add>, %29, %cst_21 [1] : vector<8x128xf32> to vector<8xf32>
    %37 = vector.shape_cast %36 : vector<8xf32> to vector<8x1xf32>
    %cst_22 = arith.constant 1.280000e+02 : f32
    %38 = vector.broadcast %cst_22 : f32 to vector<8x1xf32>
    %39 = arith.divf %37, %38 : vector<8x1xf32>
    %40 = vector.broadcast %39 : vector<8x1xf32> to vector<8x128xf32>
    %41 = arith.subf %29, %40 : vector<8x128xf32>
    %42 = arith.mulf %41, %41 : vector<8x128xf32>
    %cst_23 = arith.constant dense<0.000000e+00> : vector<8xf32>
    %43 = vector.multi_reduction <add>, %42, %cst_23 [1] : vector<8x128xf32> to vector<8xf32>
    %44 = vector.shape_cast %43 : vector<8xf32> to vector<8x1xf32>
    %cst_24 = arith.constant 1.280000e+02 : f32
    %45 = vector.broadcast %cst_24 : f32 to vector<8x1xf32>
    %46 = arith.divf %44, %45 : vector<8x1xf32>
    %cst_25 = arith.constant 9.99999974E-6 : f32
    %47 = vector.broadcast %cst_25 : f32 to vector<8x1xf32>
    %48 = arith.addf %46, %47 : vector<8x1xf32>
    %49 = math.rsqrt %48 : vector<8x1xf32>
    %50 = vector.broadcast %49 : vector<8x1xf32> to vector<8x128xf32>
    %51 = arith.mulf %41, %50 : vector<8x128xf32>
    %52 = vector.broadcast %32 : vector<1x128xf32> to vector<8x128xf32>
    %53 = arith.mulf %51, %52 : vector<8x128xf32>
    %54 = vector.broadcast %35 : vector<1x128xf32> to vector<8x128xf32>
    %55 = arith.addf %53, %54 : vector<8x128xf32>
    %c0_26 = arith.constant 0 : index
    %c0_27 = arith.constant 0 : index
    %56 = vector.load %arg7[%c0_26, %c0_27] : memref<128x128xbf16, #tpu.memory_space<vmem>>, vector<128x128xbf16>
    %cst_28 = arith.constant dense<0.000000e+00> : vector<8x128xf32>
    %57 = tpu.matmul %24, %56, %cst_28 {dimension_numbers = #tpu.dot_dimension_numbers<[1], [0], [0], [1], [0, 0, 1, 1], [], []>} : vector<8x128xbf16>, vector<128x128xbf16>, vector<8x128xf32> -> vector<8x128xf32>
    %c0_29 = arith.constant 0 : index
    %c0_30 = arith.constant 0 : index
    %58 = vector.load %arg8[%c0_29, %c0_30] : memref<1x128xf32, #tpu.memory_space<vmem>>, vector<1x128xf32>
    %59 = vector.broadcast %58 : vector<1x128xf32> to vector<8x128xf32>
    %60 = arith.addf %57, %59 : vector<8x128xf32>
    %c0_31 = arith.constant 0 : index
    %c0_32 = arith.constant 0 : index
    %61 = vector.load %arg13[%c0_31, %c0_32] : memref<1x128xf32, #tpu.memory_space<vmem>>, vector<1x128xf32>
    %c0_33 = arith.constant 0 : index
    %c0_34 = arith.constant 0 : index
    %62 = vector.load %arg14[%c0_33, %c0_34] : memref<1x128xf32, #tpu.memory_space<vmem>>, vector<1x128xf32>
    %cst_35 = arith.constant dense<0.000000e+00> : vector<8xf32>
    %63 = vector.multi_reduction <add>, %60, %cst_35 [1] : vector<8x128xf32> to vector<8xf32>
    %64 = vector.shape_cast %63 : vector<8xf32> to vector<8x1xf32>
    %cst_36 = arith.constant 1.280000e+02 : f32
    %65 = vector.broadcast %cst_36 : f32 to vector<8x1xf32>
    %66 = arith.divf %64, %65 : vector<8x1xf32>
    %67 = vector.broadcast %66 : vector<8x1xf32> to vector<8x128xf32>
    %68 = arith.subf %60, %67 : vector<8x128xf32>
    %69 = arith.mulf %68, %68 : vector<8x128xf32>
    %cst_37 = arith.constant dense<0.000000e+00> : vector<8xf32>
    %70 = vector.multi_reduction <add>, %69, %cst_37 [1] : vector<8x128xf32> to vector<8xf32>
    %71 = vector.shape_cast %70 : vector<8xf32> to vector<8x1xf32>
    %cst_38 = arith.constant 1.280000e+02 : f32
    %72 = vector.broadcast %cst_38 : f32 to vector<8x1xf32>
    %73 = arith.divf %71, %72 : vector<8x1xf32>
    %cst_39 = arith.constant 9.99999974E-6 : f32
    %74 = vector.broadcast %cst_39 : f32 to vector<8x1xf32>
    %75 = arith.addf %73, %74 : vector<8x1xf32>
    %76 = math.rsqrt %75 : vector<8x1xf32>
    %77 = vector.broadcast %76 : vector<8x1xf32> to vector<8x128xf32>
    %78 = arith.mulf %68, %77 : vector<8x128xf32>
    %79 = vector.broadcast %61 : vector<1x128xf32> to vector<8x128xf32>
    %80 = arith.mulf %78, %79 : vector<8x128xf32>
    %81 = vector.broadcast %62 : vector<1x128xf32> to vector<8x128xf32>
    %82 = arith.addf %80, %81 : vector<8x128xf32>
    %c0_40 = arith.constant 0 : index
    %c0_41 = arith.constant 0 : index
    %83 = vector.load %arg9[%c0_40, %c0_41] : memref<128x128xbf16, #tpu.memory_space<vmem>>, vector<128x128xbf16>
    %cst_42 = arith.constant dense<0.000000e+00> : vector<8x128xf32>
    %84 = tpu.matmul %24, %83, %cst_42 {dimension_numbers = #tpu.dot_dimension_numbers<[1], [0], [0], [1], [0, 0, 1, 1], [], []>} : vector<8x128xbf16>, vector<128x128xbf16>, vector<8x128xf32> -> vector<8x128xf32>
    %c0_43 = arith.constant 0 : index
    %c0_44 = arith.constant 0 : index
    %85 = vector.load %arg10[%c0_43, %c0_44] : memref<1x128xf32, #tpu.memory_space<vmem>>, vector<1x128xf32>
    %86 = vector.broadcast %85 : vector<1x128xf32> to vector<8x128xf32>
    %87 = arith.addf %84, %86 : vector<8x128xf32>
    %c0_45 = arith.constant 0 : index
    %c0_46 = arith.constant 0 : index
    %88 = vector.load %arg15[%c0_45, %c0_46] : memref<128x128xbf16, #tpu.memory_space<vmem>>, vector<128x128xbf16>
    %89 = vector.extract_strided_slice %88 {offsets = [0, 0], sizes = [64, 128], strides = [1, 1]} : vector<128x128xbf16> to vector<64x128xbf16>
    %90 = vector.extract_strided_slice %88 {offsets = [64, 0], sizes = [64, 128], strides = [1, 1]} : vector<128x128xbf16> to vector<64x128xbf16>
    %c0_47 = arith.constant 0 : index
    %c0_48 = arith.constant 0 : index
    %91 = vector.load %arg16[%c0_47, %c0_48] : memref<1x128xf32, #tpu.memory_space<vmem>>, vector<1x128xf32>
    %92 = tpu.iota {dimensions = array<i32: 0>} : vector<8x8xi32>
    %93 = tpu.iota {dimensions = array<i32: 1>} : vector<8x8xi32>
    %94 = arith.cmpi eq, %92, %93 : vector<8x8xi32>
    %c0_49 = arith.constant 0 : index
    %c0_50 = arith.constant 0 : index
    %c0_51 = arith.constant 0 : index
    %95 = vector.load %arg2[%c0_49, %c0_50, %c0_51] : memref<1x1x8xf32, #tpu.memory_space<vmem>>, vector<1x1x8xf32>
    %96 = vector.shape_cast %95 : vector<1x1x8xf32> to vector<1x8xf32>
    %cst_52 = arith.constant 5.000000e-01 : f32
    %97 = vector.broadcast %cst_52 : f32 to vector<1x8xf32>
    %98 = arith.cmpf ogt, %96, %97 : vector<1x8xf32>
    %99 = tpu.transpose %96, [1, 0] : vector<1x8xf32> -> vector<8x1xf32>
    %cst_53 = arith.constant 5.000000e-01 : f32
    %100 = vector.broadcast %cst_53 : f32 to vector<8x1xf32>
    %101 = arith.cmpf ogt, %99, %100 : vector<8x1xf32>
    %102 = vector.broadcast %101 : vector<8x1xi1> to vector<8x8xi1>
    %103 = vector.broadcast %98 : vector<1x8xi1> to vector<8x8xi1>
    %104 = arith.andi %102, %103 : vector<8x8xi1>
    %105 = arith.ori %104, %94 : vector<8x8xi1>
    %cst_54 = arith.constant 0.000000e+00 : f32
    %106 = vector.broadcast %cst_54 : f32 to vector<8x128xf32>
    %107 = vector.extract_strided_slice %55 {offsets = [0, 0], sizes = [8, 64], strides = [1, 1]} : vector<8x128xf32> to vector<8x64xf32>
    %108 = vector.extract_strided_slice %82 {offsets = [0, 0], sizes = [8, 64], strides = [1, 1]} : vector<8x128xf32> to vector<8x64xf32>
    %109 = vector.extract_strided_slice %87 {offsets = [0, 0], sizes = [8, 64], strides = [1, 1]} : vector<8x128xf32> to vector<8x64xf32>
    %cst_55 = arith.constant dense<0.000000e+00> : vector<8x8xf32>
    %110 = tpu.matmul %107, %108, %cst_55 {dimension_numbers = #tpu.dot_dimension_numbers<[1], [1], [0], [0], [0, 0, 1, 0], [], []>} : vector<8x64xf32>, vector<8x64xf32>, vector<8x8xf32> -> vector<8x8xf32>
    %cst_56 = arith.constant -1.000000e+30 : f32
    %111 = vector.broadcast %cst_56 : f32 to vector<8x8xf32>
    %112 = arith.select %105, %110, %111 : vector<8x8xi1>, vector<8x8xf32>
    %cst_57 = arith.constant dense<0xFF800000> : vector<8xf32>
    %113 = vector.multi_reduction <maximumf>, %112, %cst_57 [1] : vector<8x8xf32> to vector<8xf32>
    %114 = vector.shape_cast %113 : vector<8xf32> to vector<8x1xf32>
    %115 = vector.broadcast %114 : vector<8x1xf32> to vector<8x8xf32>
    %116 = arith.subf %112, %115 : vector<8x8xf32>
    %117 = math.exp %116 : vector<8x8xf32>
    %cst_58 = arith.constant dense<0.000000e+00> : vector<8xf32>
    %118 = vector.multi_reduction <add>, %117, %cst_58 [1] : vector<8x8xf32> to vector<8xf32>
    %119 = vector.shape_cast %118 : vector<8xf32> to vector<8x1xf32>
    %120 = tpu.reciprocal %119 {approx = true} : vector<8x1xf32> -> vector<8x1xf32>
    %121 = vector.broadcast %120 : vector<8x1xf32> to vector<8x8xf32>
    %122 = arith.mulf %117, %121 : vector<8x8xf32>
    %cst_59 = arith.constant dense<0.000000e+00> : vector<8x64xf32>
    %123 = tpu.matmul %122, %109, %cst_59 {dimension_numbers = #tpu.dot_dimension_numbers<[1], [0], [0], [1], [0, 0, 1, 1], [], []>} : vector<8x8xf32>, vector<8x64xf32>, vector<8x64xf32> -> vector<8x64xf32>
    %124 = arith.truncf %123 : vector<8x64xf32> to vector<8x64xbf16>
    %cst_60 = arith.constant dense<0.000000e+00> : vector<8x128xf32>
    %125 = tpu.matmul %124, %89, %cst_60 {dimension_numbers = #tpu.dot_dimension_numbers<[1], [0], [0], [1], [0, 0, 1, 1], [], []>} : vector<8x64xbf16>, vector<64x128xbf16>, vector<8x128xf32> -> vector<8x128xf32>
    %126 = arith.addf %106, %125 : vector<8x128xf32>
    %127 = vector.extract_strided_slice %55 {offsets = [0, 64], sizes = [8, 64], strides = [1, 1]} : vector<8x128xf32> to vector<8x64xf32>
    %128 = vector.extract_strided_slice %82 {offsets = [0, 64], sizes = [8, 64], strides = [1, 1]} : vector<8x128xf32> to vector<8x64xf32>
    %129 = vector.extract_strided_slice %87 {offsets = [0, 64], sizes = [8, 64], strides = [1, 1]} : vector<8x128xf32> to vector<8x64xf32>
    %cst_61 = arith.constant dense<0.000000e+00> : vector<8x8xf32>
    %130 = tpu.matmul %127, %128, %cst_61 {dimension_numbers = #tpu.dot_dimension_numbers<[1], [1], [0], [0], [0, 0, 1, 0], [], []>} : vector<8x64xf32>, vector<8x64xf32>, vector<8x8xf32> -> vector<8x8xf32>
    %cst_62 = arith.constant -1.000000e+30 : f32
    %131 = vector.broadcast %cst_62 : f32 to vector<8x8xf32>
    %132 = arith.select %105, %130, %131 : vector<8x8xi1>, vector<8x8xf32>
    %cst_63 = arith.constant dense<0xFF800000> : vector<8xf32>
    %133 = vector.multi_reduction <maximumf>, %132, %cst_63 [1] : vector<8x8xf32> to vector<8xf32>
    %134 = vector.shape_cast %133 : vector<8xf32> to vector<8x1xf32>
    %135 = vector.broadcast %134 : vector<8x1xf32> to vector<8x8xf32>
    %136 = arith.subf %132, %135 : vector<8x8xf32>
    %137 = math.exp %136 : vector<8x8xf32>
    %cst_64 = arith.constant dense<0.000000e+00> : vector<8xf32>
    %138 = vector.multi_reduction <add>, %137, %cst_64 [1] : vector<8x8xf32> to vector<8xf32>
    %139 = vector.shape_cast %138 : vector<8xf32> to vector<8x1xf32>
    %140 = tpu.reciprocal %139 {approx = true} : vector<8x1xf32> -> vector<8x1xf32>
    %141 = vector.broadcast %140 : vector<8x1xf32> to vector<8x8xf32>
    %142 = arith.mulf %137, %141 : vector<8x8xf32>
    %cst_65 = arith.constant dense<0.000000e+00> : vector<8x64xf32>
    %143 = tpu.matmul %142, %129, %cst_65 {dimension_numbers = #tpu.dot_dimension_numbers<[1], [0], [0], [1], [0, 0, 1, 1], [], []>} : vector<8x8xf32>, vector<8x64xf32>, vector<8x64xf32> -> vector<8x64xf32>
    %144 = arith.truncf %143 : vector<8x64xf32> to vector<8x64xbf16>
    %cst_66 = arith.constant dense<0.000000e+00> : vector<8x128xf32>
    %145 = tpu.matmul %144, %90, %cst_66 {dimension_numbers = #tpu.dot_dimension_numbers<[1], [0], [0], [1], [0, 0, 1, 1], [], []>} : vector<8x64xbf16>, vector<64x128xbf16>, vector<8x128xf32> -> vector<8x128xf32>
    %146 = arith.addf %126, %145 : vector<8x128xf32>
    %147 = vector.broadcast %91 : vector<1x128xf32> to vector<8x128xf32>
    %148 = arith.addf %146, %147 : vector<8x128xf32>
    %c0_67 = arith.constant 0 : index
    %c0_68 = arith.constant 0 : index
    %c0_69 = arith.constant 0 : index
    %149 = vector.load %arg17[%c0_67, %c0_68, %c0_69] : memref<1x8x128xf32, #tpu.memory_space<vmem>>, vector<1x8x128xf32>
    %150 = vector.shape_cast %149 : vector<1x8x128xf32> to vector<8x128xf32>
    %151 = vector.shape_cast %148 : vector<8x128xf32> to vector<1x8x128xf32>
    tpu.vector_store %arg17[%c0_67, %c0_68, %c0_69], %151 {strides = array<i32>} : memref<1x8x128xf32, #tpu.memory_space<vmem>>, vector<1x8x128xf32>,
    return
  }
  func.func @transform_0(%arg0: i32) -> (i32, i32, i32) {
    %c0_i32 = arith.constant 0 : i32
    %c0_i32_0 = arith.constant 0 : i32
    %c0_i32_1 = arith.constant 0 : i32
    return %arg0, %c0_i32, %c0_i32_0 : i32, i32, i32
  }
  func.func @transform_1(%arg0: i32) -> (i32, i32, i32) {
    %c0_i32 = arith.constant 0 : i32
    %c0_i32_0 = arith.constant 0 : i32
    %c0_i32_1 = arith.constant 0 : i32
    return %arg0, %c0_i32, %c0_i32_0 : i32, i32, i32
  }
  func.func @transform_2(%arg0: i32) -> (i32, i32) {
    %c0_i32 = arith.constant 0 : i32
    %c0_i32_0 = arith.constant 0 : i32
    %c0_i32_1 = arith.constant 0 : i32
    return %c0_i32, %c0_i32_0 : i32, i32
  }
  func.func @transform_3(%arg0: i32) -> (i32, i32) {
    %c0_i32 = arith.constant 0 : i32
    %c0_i32_0 = arith.constant 0 : i32
    %c0_i32_1 = arith.constant 0 : i32
    return %c0_i32, %c0_i32_0 : i32, i32
  }
  func.func @transform_4(%arg0: i32) -> (i32, i32) {
    %c0_i32 = arith.constant 0 : i32
    %c0_i32_0 = arith.constant 0 : i32
    %c0_i32_1 = arith.constant 0 : i32
    return %c0_i32, %c0_i32_0 : i32, i32
  }
  func.func @transform_5(%arg0: i32) -> (i32, i32) {
    %c0_i32 = arith.constant 0 : i32
    %c0_i32_0 = arith.constant 0 : i32
    %c0_i32_1 = arith.constant 0 : i32
    return %c0_i32, %c0_i32_0 : i32, i32
  }
  func.func @transform_6(%arg0: i32) -> (i32, i32) {
    %c0_i32 = arith.constant 0 : i32
    %c0_i32_0 = arith.constant 0 : i32
    %c0_i32_1 = arith.constant 0 : i32
    return %c0_i32, %c0_i32_0 : i32, i32
  }
  func.func @transform_7(%arg0: i32) -> (i32, i32) {
    %c0_i32 = arith.constant 0 : i32
    %c0_i32_0 = arith.constant 0 : i32
    %c0_i32_1 = arith.constant 0 : i32
    return %c0_i32, %c0_i32_0 : i32, i32
  }
  func.func @transform_8(%arg0: i32) -> (i32, i32) {
    %c0_i32 = arith.constant 0 : i32
    %c0_i32_0 = arith.constant 0 : i32
    %c0_i32_1 = arith.constant 0 : i32
    return %c0_i32, %c0_i32_0 : i32, i32
  }
  func.func @transform_9(%arg0: i32) -> (i32, i32) {
    %c0_i32 = arith.constant 0 : i32
    %c0_i32_0 = arith.constant 0 : i32
    %c0_i32_1 = arith.constant 0 : i32
    return %c0_i32, %c0_i32_0 : i32, i32
  }
  func.func @transform_10(%arg0: i32) -> (i32, i32) {
    %c0_i32 = arith.constant 0 : i32
    %c0_i32_0 = arith.constant 0 : i32
    %c0_i32_1 = arith.constant 0 : i32
    return %c0_i32, %c0_i32_0 : i32, i32
  }
  func.func @transform_11(%arg0: i32) -> (i32, i32) {
    %c0_i32 = arith.constant 0 : i32
    %c0_i32_0 = arith.constant 0 : i32
    %c0_i32_1 = arith.constant 0 : i32
    return %c0_i32, %c0_i32_0 : i32, i32
  }
  func.func @transform_12(%arg0: i32) -> (i32, i32) {
    %c0_i32 = arith.constant 0 : i32
    %c0_i32_0 = arith.constant 0 : i32
    %c0_i32_1 = arith.constant 0 : i32
    return %c0_i32, %c0_i32_0 : i32, i32
  }
  func.func @transform_13(%arg0: i32) -> (i32, i32) {
    %c0_i32 = arith.constant 0 : i32
    %c0_i32_0 = arith.constant 0 : i32
    %c0_i32_1 = arith.constant 0 : i32
    return %c0_i32, %c0_i32_0 : i32, i32
  }
  func.func @transform_14(%arg0: i32) -> (i32, i32) {
    %c0_i32 = arith.constant 0 : i32
    %c0_i32_0 = arith.constant 0 : i32
    %c0_i32_1 = arith.constant 0 : i32
    return %c0_i32, %c0_i32_0 : i32, i32
  }
  func.func @transform_15(%arg0: i32) -> (i32, i32) {
    %c0_i32 = arith.constant 0 : i32
    %c0_i32_0 = arith.constant 0 : i32
    %c0_i32_1 = arith.constant 0 : i32
    return %c0_i32, %c0_i32_0 : i32, i32
  }
  func.func @transform_16(%arg0: i32) -> (i32, i32, i32) {
    %c0_i32 = arith.constant 0 : i32
    %c0_i32_0 = arith.constant 0 : i32
    %c0_i32_1 = arith.constant 0 : i32
    return %arg0, %c0_i32, %c0_i32_0 : i32, i32, i32
  }
}

</mosaic_0001>

<llo_original>
// kernel: tpu_custom_call.1
$region0: #{tpu_custom_call.1}
  #allocation0 [shape = 'u32[]', space=smem, size = 0x4, offset = 0x4, fixed_abs, tag = 'smem constant byte address 0x4 - core index']
  #allocation1 [shape = 'u32[72,128]{1,0:T(1,128)}', space=vmem, size = 0x9000, scoped, tag = 'internal scratch']
  %s0 = inlined_call_operand.hbm [shape: f32[2,8,128], index: 0, kind: input, shape index: {}]
  %s1 = inlined_call_operand.hbm [shape: f32[2,1,8], index: 1, kind: input, shape index: {}]
  %s2 = inlined_call_operand.vmem [shape: f32[1,128], index: 2, kind: input, shape index: {}]
  %s3 = inlined_call_operand.vmem [shape: f32[1,128], index: 3, kind: input, shape index: {}]
  %s4 = inlined_call_operand.hbm [shape: bf16[128,128], index: 4, kind: input, shape index: {}]
  %s5 = inlined_call_operand.vmem [shape: f32[1,128], index: 5, kind: input, shape index: {}]
  %s6 = inlined_call_operand.hbm [shape: bf16[128,128], index: 6, kind: input, shape index: {}]
  %s7 = inlined_call_operand.vmem [shape: f32[1,128], index: 7, kind: input, shape index: {}]
  %s8 = inlined_call_operand.hbm [shape: bf16[128,128], index: 8, kind: input, shape index: {}]
  %s9 = inlined_call_operand.vmem [shape: f32[1,128], index: 9, kind: input, shape index: {}]
  %s10 = inlined_call_operand.vmem [shape: f32[1,128], index: 10, kind: input, shape index: {}]
  %s11 = inlined_call_operand.vmem [shape: f32[1,128], index: 11, kind: input, shape index: {}]
  %s12 = inlined_call_operand.vmem [shape: f32[1,128], index: 12, kind: input, shape index: {}]
  %s13 = inlined_call_operand.vmem [shape: f32[1,128], index: 13, kind: input, shape index: {}]
  %s14 = inlined_call_operand.hbm [shape: bf16[128,128], index: 14, kind: input, shape index: {}]
  %s15 = inlined_call_operand.vmem [shape: f32[1,128], index: 15, kind: input, shape index: {}]
  %s16 = inlined_call_operand.hbm [shape: f32[2,8,128], index: 16, kind: output, shape index: {}]
  %s17 = sld [smem:[#allocation0]]
  $region121: #{tpu_custom_call.1} parent=0
    _
  %s19 = ssub.s32 1, %s17
  %s20 = scalar_select 0, %s19, %s17
  $region1: #{tpu_custom_call.1} parent=0
    #allocation2 [shape = 'u8[8192]{0}', space=vmem, size = 0x2000, scoped, tag = 'input window, operand 0']
    #allocation3 [shape = 's32[2]{0}', space=sflag, size = 0x8, scoped, tag = 'scoped memory for tpu_custom_call.1']
    #allocation4 [shape = 's32[2]{0}', space=sflag, size = 0x8, scoped, tag = 'scoped memory for tpu_custom_call.1']
    #allocation5 [shape = 'u8[1024]{0}', space=vmem, size = 0x400, scoped, tag = 'input window, operand 1']
    #allocation6 [shape = 's32[2]{0}', space=sflag, size = 0x8, scoped, tag = 'scoped memory for tpu_custom_call.1']
    #allocation7 [shape = 'u8[32768]{0}', space=vmem, size = 0x8000, scoped, tag = 'input window, operand 4, single buffered']
    #allocation8 [shape = 'u8[32768]{0}', space=vmem, size = 0x8000, scoped, tag = 'input window, operand 6, single buffered']
    #allocation9 [shape = 's32[1]{0}', space=sflag, size = 0x4, scoped, tag = 'scoped memory for tpu_custom_call.1']
    #allocation10 [shape = 'u8[32768]{0}', space=vmem, size = 0x8000, scoped, tag = 'input window, operand 8, single buffered']
    #allocation11 [shape = 'u8[32768]{0}', space=vmem, size = 0x8000, scoped, tag = 'input window, operand 14, single buffered']
    #allocation12 [shape = 's32[1]{0}', space=sflag, size = 0x4, scoped, tag = 'scoped memory for tpu_custom_call.1']
    #allocation13 [shape = 'u8[8192]{0}', space=vmem, size = 0x2000, scoped, tag = 'output window, operand 0']
    %21 = vsyncpa [#allocation3], 0
    %s22 = scalar_lea.sflag [#allocation3], 1
    %23 = vsyncpa %s22, 0
    %24 = vsyncpa [#allocation6], 0
    %s25 = scalar_lea.sflag [#allocation6], 1
    %26 = vsyncpa %s25, 0
    %27 = vsyncpa [#allocation9], 0
    %28 = vsyncpa [#allocation12], 0
    %29 = vsyncpa [#allocation4], 0
    %s30 = scalar_lea.sflag [#allocation4], 1
    %31 = vsyncpa %s30, 0
    loop: start=0, step=1, limit=4
    $region2: #{tpu_custom_call.1} parent=1 // loop_pre_header
      _
    $region3: #{tpu_custom_call.1} parent=1 // loop_header
      %s33 = sphi 0, %s37
      %p34 = scmp.ge.s32.totalorder %s33, 4
      %s43 = sphi 0, %s45
      %s46 = sphi 0, %s43
      %s47 = sphi 0, %s46
      %s63 = sphi 0, %s47
      %s69 = sphi 0, %s71
      %s72 = sphi 0, %s69
      %s73 = sphi 0, %s72
      %s89 = sphi 0, %s73
      %s93 = sphi 0, %s93
      %s95 = sphi 0, %s93
      %s96 = sphi 0, %s95
      %s110 = sphi 0, %s96
      %s114 = sphi 0, %s114
      %s116 = sphi 0, %s114
      %s117 = sphi 0, %s116
      %s131 = sphi 0, %s117
      %s135 = sphi 0, %s135
      %s137 = sphi 0, %s135
      %s138 = sphi 0, %s137
      %s152 = sphi 0, %s138
      %s156 = sphi 0, %s156
      %s158 = sphi 0, %s156
      %s159 = sphi 0, %s158
      %s173 = sphi 0, %s159
      %s177 = sphi 0, %s177
      %s179 = sphi 0, %s177
      %s180 = sphi 0, %s179
      %s194 = sphi 0, %s180
      %s198 = sphi 0, %s198
      %s200 = sphi 0, %s198
      %s201 = sphi 0, %s200
      %s215 = sphi 0, %s201
      %s219 = sphi 0, %s219
      %s221 = sphi 0, %s219
      %s222 = sphi 0, %s221
      %s236 = sphi 0, %s222
      %s240 = sphi 0, %s240
      %s242 = sphi 0, %s240
      %s243 = sphi 0, %s242
      %s257 = sphi 0, %s243
      %s261 = sphi 0, %s261
      %s263 = sphi 0, %s261
      %s264 = sphi 0, %s263
      %s278 = sphi 0, %s264
      %s282 = sphi 0, %s282
      %s284 = sphi 0, %s282
      %s285 = sphi 0, %s284
      %s299 = sphi 0, %s285
      %s303 = sphi 0, %s303
      %s305 = sphi 0, %s303
      %s306 = sphi 0, %s305
      %s320 = sphi 0, %s306
      %s324 = sphi 0, %s324
      %s326 = sphi 0, %s324
      %s327 = sphi 0, %s326
      %s341 = sphi 0, %s327
      %s345 = sphi 0, %s345
      %s347 = sphi 0, %s345
      %s348 = sphi 0, %s347
      %s362 = sphi 0, %s348
      %s366 = sphi 0, %s366
      %s368 = sphi 0, %s366
      %s369 = sphi 0, %s368
      %s383 = sphi 0, %s369
      %s389 = sphi 0, %s391
      %s392 = sphi 0, %s389
      %s393 = sphi 0, %s392
      %s409 = sphi 0, %s393
    $region4: #{tpu_custom_call.1} parent=1 // loop_header_branch
      %36 = sbr.rel (%p34) target = $region8
    $region5: #{tpu_custom_call.1} parent=1 // loop_body
      %s38 = ssub.s32 %s33, 1
      %s39 = ssub.s32 %s33, 2
      %s40 = sadd.s32 %s33, 1
      %s41 = ssub.s32 %s33, %s40
      %p42 = scmp.eq.s32.totalorder %s41, 0
      %s44 = sadd.s32 %s43, 1
      %s45 = scalar_select %p42, %s43, %s44
      %p48 = pneg %p42
      %p49 = scmp.eq.s32.totalorder %s33, 1
      %p50 = por %p48, %p49
      %p51 = scmp.ne.s32.totalorder %s43, %s46
      %p52 = scmp.eq.s32.totalorder %s33, 0
      %p53 = por %p51, %p52
      %p54 = scmp.ne.s32.totalorder %s43, %s46
      %p55 = scmp.eq.s32.totalorder %s38, 1
      %p56 = por %p54, %p55
      %p57 = scmp.ne.s32.totalorder %s46, %s47
      %p58 = scmp.eq.s32.totalorder %s38, 0
      %p59 = por %p57, %p58
      %p60 = scmp.ne.s32.totalorder %s46, %s47
      %p61 = scmp.eq.s32.totalorder %s39, 1
      %p62 = por %p60, %p61
      %p64 = scmp.ne.s32.totalorder %s47, %s63
      %p65 = scmp.eq.s32.totalorder %s39, 0
      %p66 = por %p64, %p65
      %s67 = ssub.s32 %s33, %s40
      %p68 = scmp.eq.s32.totalorder %s67, 0
      %s70 = sadd.s32 %s69, 1
      %s71 = scalar_select %p68, %s69, %s70
      %p74 = pneg %p68
      %p75 = scmp.eq.s32.totalorder %s33, 1
      %p76 = por %p74, %p75
      %p77 = scmp.ne.s32.totalorder %s69, %s72
      %p78 = scmp.eq.s32.totalorder %s33, 0
      %p79 = por %p77, %p78
      %p80 = scmp.ne.s32.totalorder %s69, %s72
      %p81 = scmp.eq.s32.totalorder %s38, 1
      %p82 = por %p80, %p81
      %p83 = scmp.ne.s32.totalorder %s72, %s73
      %p84 = scmp.eq.s32.totalorder %s38, 0
      %p85 = por %p83, %p84
      %p86 = scmp.ne.s32.totalorder %s72, %s73
      %p87 = scmp.eq.s32.totalorder %s39, 1
      %p88 = por %p86, %p87
      %p90 = scmp.ne.s32.totalorder %s73, %s89
      %p91 = scmp.eq.s32.totalorder %s39, 0
      %p92 = por %p90, %p91
      %s94 = sadd.s32 %s93, 1
      %p97 = scmp.eq.s32.totalorder %s33, 1
      %p98 = scmp.ne.s32.totalorder %s93, %s95
      %p99 = scmp.eq.s32.totalorder %s33, 0
      %p100 = por %p98, %p99
      %p101 = scmp.ne.s32.totalorder %s93, %s95
      %p102 = scmp.eq.s32.totalorder %s38, 1
      %p103 = por %p101, %p102
      %p104 = scmp.ne.s32.totalorder %s95, %s96
      %p105 = scmp.eq.s32.totalorder %s38, 0
      %p106 = por %p104, %p105
      %p107 = scmp.ne.s32.totalorder %s95, %s96
      %p108 = scmp.eq.s32.totalorder %s39, 1
      %p109 = por %p107, %p108
      %p111 = scmp.ne.s32.totalorder %s96, %s110
      %p112 = scmp.eq.s32.totalorder %s39, 0
      %p113 = por %p111, %p112
      %s115 = sadd.s32 %s114, 1
      %p118 = scmp.eq.s32.totalorder %s33, 1
      %p119 = scmp.ne.s32.totalorder %s114, %s116
      %p120 = scmp.eq.s32.totalorder %s33, 0
      %p121 = por %p119, %p120
      %p122 = scmp.ne.s32.totalorder %s114, %s116
      %p123 = scmp.eq.s32.totalorder %s38, 1
      %p124 = por %p122, %p123
      %p125 = scmp.ne.s32.totalorder %s116, %s117
      %p126 = scmp.eq.s32.totalorder %s38, 0
      %p127 = por %p125, %p126
      %p128 = scmp.ne.s32.totalorder %s116, %s117
      %p129 = scmp.eq.s32.totalorder %s39, 1
      %p130 = por %p128, %p129
      %p132 = scmp.ne.s32.totalorder %s117, %s131
      %p133 = scmp.eq.s32.totalorder %s39, 0
      %p134 = por %p132, %p133
      %s136 = sadd.s32 %s135, 1
      %p139 = scmp.eq.s32.totalorder %s33, 1
      %p140 = scmp.ne.s32.totalorder %s135, %s137
      %p141 = scmp.eq.s32.totalorder %s33, 0
      %p142 = por %p140, %p141
      %p143 = scmp.ne.s32.totalorder %s135, %s137
      %p144 = scmp.eq.s32.totalorder %s38, 1
      %p145 = por %p143, %p144
      %p146 = scmp.ne.s32.totalorder %s137, %s138
      %p147 = scmp.eq.s32.totalorder %s38, 0
      %p148 = por %p146, %p147
      %p149 = scmp.ne.s32.totalorder %s137, %s138
      %p150 = scmp.eq.s32.totalorder %s39, 1
      %p151 = por %p149, %p150
      %p153 = scmp.ne.s32.totalorder %s138, %s152
      %p154 = scmp.eq.s32.totalorder %s39, 0
      %p155 = por %p153, %p154
      %s157 = sadd.s32 %s156, 1
      %p160 = scmp.eq.s32.totalorder %s33, 1
      %p161 = scmp.ne.s32.totalorder %s156, %s158
      %p162 = scmp.eq.s32.totalorder %s33, 0
      %p163 = por %p161, %p162
      %p164 = scmp.ne.s32.totalorder %s156, %s158
      %p165 = scmp.eq.s32.totalorder %s38, 1
      %p166 = por %p164, %p165
      %p167 = scmp.ne.s32.totalorder %s158, %s159
      %p168 = scmp.eq.s32.totalorder %s38, 0
      %p169 = por %p167, %p168
      %p170 = scmp.ne.s32.totalorder %s158, %s159
      %p171 = scmp.eq.s32.totalorder %s39, 1
      %p172 = por %p170, %p171
      %p174 = scmp.ne.s32.totalorder %s159, %s173
      %p175 = scmp.eq.s32.totalorder %s39, 0
      %p176 = por %p174, %p175
      %s178 = sadd.s32 %s177, 1
      %p181 = scmp.eq.s32.totalorder %s33, 1
      %p182 = scmp.ne.s32.totalorder %s177, %s179
      %p183 = scmp.eq.s32.totalorder %s33, 0
      %p184 = por %p182, %p183
      %p185 = scmp.ne.s32.totalorder %s177, %s179
      %p186 = scmp.eq.s32.totalorder %s38, 1
      %p187 = por %p185, %p186
      %p188 = scmp.ne.s32.totalorder %s179, %s180
      %p189 = scmp.eq.s32.totalorder %s38, 0
      %p190 = por %p188, %p189
      %p191 = scmp.ne.s32.totalorder %s179, %s180
      %p192 = scmp.eq.s32.totalorder %s39, 1
      %p193 = por %p191, %p192
      %p195 = scmp.ne.s32.totalorder %s180, %s194
      %p196 = scmp.eq.s32.totalorder %s39, 0
      %p197 = por %p195, %p196
      %s199 = sadd.s32 %s198, 1
      %p202 = scmp.eq.s32.totalorder %s33, 1
      %p203 = scmp.ne.s32.totalorder %s198, %s200
      %p204 = scmp.eq.s32.totalorder %s33, 0
      %p205 = por %p203, %p204
      %p206 = scmp.ne.s32.totalorder %s198, %s200
      %p207 = scmp.eq.s32.totalorder %s38, 1
      %p208 = por %p206, %p207
      %p209 = scmp.ne.s32.totalorder %s200, %s201
      %p210 = scmp.eq.s32.totalorder %s38, 0
      %p211 = por %p209, %p210
      %p212 = scmp.ne.s32.totalorder %s200, %s201
      %p213 = scmp.eq.s32.totalorder %s39, 1
      %p214 = por %p212, %p213
      %p216 = scmp.ne.s32.totalorder %s201, %s215
      %p217 = scmp.eq.s32.totalorder %s39, 0
      %p218 = por %p216, %p217
      %s220 = sadd.s32 %s219, 1
      %p223 = scmp.eq.s32.totalorder %s33, 1
      %p224 = scmp.ne.s32.totalorder %s219, %s221
      %p225 = scmp.eq.s32.totalorder %s33, 0
      %p226 = por %p224, %p225
      %p227 = scmp.ne.s32.totalorder %s219, %s221
      %p228 = scmp.eq.s32.totalorder %s38, 1
      %p229 = por %p227, %p228
      %p230 = scmp.ne.s32.totalorder %s221, %s222
      %p231 = scmp.eq.s32.totalorder %s38, 0
      %p232 = por %p230, %p231
      %p233 = scmp.ne.s32.totalorder %s221, %s222
      %p234 = scmp.eq.s32.totalorder %s39, 1
      %p235 = por %p233, %p234
      %p237 = scmp.ne.s32.totalorder %s222, %s236
      %p238 = scmp.eq.s32.totalorder %s39, 0
      %p239 = por %p237, %p238
      %s241 = sadd.s32 %s240, 1
      %p244 = scmp.eq.s32.totalorder %s33, 1
      %p245 = scmp.ne.s32.totalorder %s240, %s242
      %p246 = scmp.eq.s32.totalorder %s33, 0
      %p247 = por %p245, %p246
      %p248 = scmp.ne.s32.totalorder %s240, %s242
      %p249 = scmp.eq.s32.totalorder %s38, 1
      %p250 = por %p248, %p249
      %p251 = scmp.ne.s32.totalorder %s242, %s243
      %p252 = scmp.eq.s32.totalorder %s38, 0
      %p253 = por %p251, %p252
      %p254 = scmp.ne.s32.totalorder %s242, %s243
      %p255 = scmp.eq.s32.totalorder %s39, 1
      %p256 = por %p254, %p255
      %p258 = scmp.ne.s32.totalorder %s243, %s257
      %p259 = scmp.eq.s32.totalorder %s39, 0
      %p260 = por %p258, %p259
      %s262 = sadd.s32 %s261, 1
      %p265 = scmp.eq.s32.totalorder %s33, 1
      %p266 = scmp.ne.s32.totalorder %s261, %s263
      %p267 = scmp.eq.s32.totalorder %s33, 0
      %p268 = por %p266, %p267
      %p269 = scmp.ne.s32.totalorder %s261, %s263
      %p270 = scmp.eq.s32.totalorder %s38, 1
      %p271 = por %p269, %p270
      %p272 = scmp.ne.s32.totalorder %s263, %s264
      %p273 = scmp.eq.s32.totalorder %s38, 0
      %p274 = por %p272, %p273
      %p275 = scmp.ne.s32.totalorder %s263, %s264
      %p276 = scmp.eq.s32.totalorder %s39, 1
      %p277 = por %p275, %p276
      %p279 = scmp.ne.s32.totalorder %s264, %s278
      %p280 = scmp.eq.s32.totalorder %s39, 0
      %p281 = por %p279, %p280
      %s283 = sadd.s32 %s282, 1
      %p286 = scmp.eq.s32.totalorder %s33, 1
      %p287 = scmp.ne.s32.totalorder %s282, %s284
      %p288 = scmp.eq.s32.totalorder %s33, 0
      %p289 = por %p287, %p288
      %p290 = scmp.ne.s32.totalorder %s282, %s284
      %p291 = scmp.eq.s32.totalorder %s38, 1
      %p292 = por %p290, %p291
      %p293 = scmp.ne.s32.totalorder %s284, %s285
      %p294 = scmp.eq.s32.totalorder %s38, 0
      %p295 = por %p293, %p294
      %p296 = scmp.ne.s32.totalorder %s284, %s285
      %p297 = scmp.eq.s32.totalorder %s39, 1
      %p298 = por %p296, %p297
      %p300 = scmp.ne.s32.totalorder %s285, %s299
      %p301 = scmp.eq.s32.totalorder %s39, 0
      %p302 = por %p300, %p301
      %s304 = sadd.s32 %s303, 1
      %p307 = scmp.eq.s32.totalorder %s33, 1
      %p308 = scmp.ne.s32.totalorder %s303, %s305
      %p309 = scmp.eq.s32.totalorder %s33, 0
      %p310 = por %p308, %p309
      %p311 = scmp.ne.s32.totalorder %s303, %s305
      %p312 = scmp.eq.s32.totalorder %s38, 1
      %p313 = por %p311, %p312
      %p314 = scmp.ne.s32.totalorder %s305, %s306
      %p315 = scmp.eq.s32.totalorder %s38, 0
      %p316 = por %p314, %p315
      %p317 = scmp.ne.s32.totalorder %s305, %s306
      %p318 = scmp.eq.s32.totalorder %s39, 1
      %p319 = por %p317, %p318
      %p321 = scmp.ne.s32.totalorder %s306, %s320
      %p322 = scmp.eq.s32.totalorder %s39, 0
      %p323 = por %p321, %p322
      %s325 = sadd.s32 %s324, 1
      %p328 = scmp.eq.s32.totalorder %s33, 1
      %p329 = scmp.ne.s32.totalorder %s324, %s326
      %p330 = scmp.eq.s32.totalorder %s33, 0
      %p331 = por %p329, %p330
      %p332 = scmp.ne.s32.totalorder %s324, %s326
      %p333 = scmp.eq.s32.totalorder %s38, 1
      %p334 = por %p332, %p333
      %p335 = scmp.ne.s32.totalorder %s326, %s327
      %p336 = scmp.eq.s32.totalorder %s38, 0
      %p337 = por %p335, %p336
      %p338 = scmp.ne.s32.totalorder %s326, %s327
      %p339 = scmp.eq.s32.totalorder %s39, 1
      %p340 = por %p338, %p339
      %p342 = scmp.ne.s32.totalorder %s327, %s341
      %p343 = scmp.eq.s32.totalorder %s39, 0
      %p344 = por %p342, %p343
      %s346 = sadd.s32 %s345, 1
      %p349 = scmp.eq.s32.totalorder %s33, 1
      %p350 = scmp.ne.s32.totalorder %s345, %s347
      %p351 = scmp.eq.s32.totalorder %s33, 0
      %p352 = por %p350, %p351
      %p353 = scmp.ne.s32.totalorder %s345, %s347
      %p354 = scmp.eq.s32.totalorder %s38, 1
      %p355 = por %p353, %p354
      %p356 = scmp.ne.s32.totalorder %s347, %s348
      %p357 = scmp.eq.s32.totalorder %s38, 0
      %p358 = por %p356, %p357
      %p359 = scmp.ne.s32.totalorder %s347, %s348
      %p360 = scmp.eq.s32.totalorder %s39, 1
      %p361 = por %p359, %p360
      %p363 = scmp.ne.s32.totalorder %s348, %s362
      %p364 = scmp.eq.s32.totalorder %s39, 0
      %p365 = por %p363, %p364
      %s367 = sadd.s32 %s366, 1
      %p370 = scmp.eq.s32.totalorder %s33, 1
      %p371 = scmp.ne.s32.totalorder %s366, %s368
      %p372 = scmp.eq.s32.totalorder %s33, 0
      %p373 = por %p371, %p372
      %p374 = scmp.ne.s32.totalorder %s366, %s368
      %p375 = scmp.eq.s32.totalorder %s38, 1
      %p376 = por %p374, %p375
      %p377 = scmp.ne.s32.totalorder %s368, %s369
      %p378 = scmp.eq.s32.totalorder %s38, 0
      %p379 = por %p377, %p378
      %p380 = scmp.ne.s32.totalorder %s368, %s369
      %p381 = scmp.eq.s32.totalorder %s39, 1
      %p382 = por %p380, %p381
      %p384 = scmp.ne.s32.totalorder %s369, %s383
      %p385 = scmp.eq.s32.totalorder %s39, 0
      %p386 = por %p384, %p385
      %s387 = ssub.s32 %s33, %s40
      %p388 = scmp.eq.s32.totalorder %s387, 0
      %s390 = sadd.s32 %s389, 1
      %s391 = scalar_select %p388, %s389, %s390
      %p394 = pneg %p388
      %p395 = scmp.eq.s32.totalorder %s33, 1
      %p396 = por %p394, %p395
      %p397 = scmp.ne.s32.totalorder %s389, %s392
      %p398 = scmp.eq.s32.totalorder %s33, 0
      %p399 = por %p397, %p398
      %p400 = scmp.ne.s32.totalorder %s389, %s392
      %p401 = scmp.eq.s32.totalorder %s38, 1
      %p402 = por %p400, %p401
      %p403 = scmp.ne.s32.totalorder %s392, %s393
      %p404 = scmp.eq.s32.totalorder %s38, 0
      %p405 = por %p403, %p404
      %p406 = scmp.ne.s32.totalorder %s392, %s393
      %p407 = scmp.eq.s32.totalorder %s39, 1
      %p408 = por %p406, %p407
      %p410 = scmp.ne.s32.totalorder %s393, %s409
      %p411 = scmp.eq.s32.totalorder %s39, 0
      %p412 = por %p410, %p411
      %p413 = scmp.le.s32.totalorder 1, %s33
      %p414 = scmp.lt.s32.totalorder %s33, 3
      %p415 = pnand %p413, %p414
      %p416 = pneg %p415
      // Predicated region
      $region9: #{tpu_custom_call.1} parent=5 // pred_check
        _
      $region10: #{tpu_custom_call.1} parent=5 // pred_check_branch
        %418 = sbr.rel (%p415) target = $region12
      $region11: #{tpu_custom_call.1} parent=5 // pred_region
        %s419 = ssub.s32 %s33, 1
        // Predicated region
        $region13: #{tpu_custom_call.1} parent=11 // pred_check
          %p420 = pneg %p106
        $region14: #{tpu_custom_call.1} parent=11 // pred_check_branch
          %422 = sbr.rel (%p420) target = $region16
        $region15: #{tpu_custom_call.1} parent=11 // pred_region
          _
        $region16: #{tpu_custom_call.1} parent=11 // pred_fallthru
          _
        // Predicated region
        $region17: #{tpu_custom_call.1} parent=11 // pred_check
          %p423 = pneg %p127
        $region18: #{tpu_custom_call.1} parent=11 // pred_check_branch
          %425 = sbr.rel (%p423) target = $region20
        $region19: #{tpu_custom_call.1} parent=11 // pred_region
          _
        $region20: #{tpu_custom_call.1} parent=11 // pred_fallthru
          _
        // Predicated region
        $region21: #{tpu_custom_call.1} parent=11 // pred_check
          %p426 = pneg %p148
        $region22: #{tpu_custom_call.1} parent=11 // pred_check_branch
          %428 = sbr.rel (%p426) target = $region24
        $region23: #{tpu_custom_call.1} parent=11 // pred_region
          %430 = vsyncadd [#allocation6], 0
          %s431 = sshll.u32 %s4, 4
          %s432 = int_to_ptr.hbm [resolvable:$true] %s431
          %s433 = sshll.u32 [#allocation7], 4
          %s434 = int_to_ptr.vmem [resolvable:$true] %s433
          %439 = dma.hbm_to_vmem [thread:$0]  %s432, 1024, %s434, [#allocation6], 64, 64, 4
        $region24: #{tpu_custom_call.1} parent=11 // pred_fallthru
          _
        // Predicated region
        $region25: #{tpu_custom_call.1} parent=11 // pred_check
          %p440 = pneg %p169
        $region26: #{tpu_custom_call.1} parent=11 // pred_check_branch
          %442 = sbr.rel (%p440) target = $region28
        $region27: #{tpu_custom_call.1} parent=11 // pred_region
          _
        $region28: #{tpu_custom_call.1} parent=11 // pred_fallthru
          _
        // Predicated region
        $region29: #{tpu_custom_call.1} parent=11 // pred_check
          %p443 = pneg %p190
        $region30: #{tpu_custom_call.1} parent=11 // pred_check_branch
          %445 = sbr.rel (%p443) target = $region32
        $region31: #{tpu_custom_call.1} parent=11 // pred_region
          %447 = vsyncadd [#allocation9], 0
          %s448 = sshll.u32 %s6, 4
          %s449 = int_to_ptr.hbm [resolvable:$true] %s448
          %s450 = sshll.u32 [#allocation8], 4
          %s451 = int_to_ptr.vmem [resolvable:$true] %s450
          %456 = dma.hbm_to_vmem [thread:$0]  %s449, 1024, %s451, [#allocation9], 64, 64, 4
        $region32: #{tpu_custom_call.1} parent=11 // pred_fallthru
          _
        // Predicated region
        $region33: #{tpu_custom_call.1} parent=11 // pred_check
          %p457 = pneg %p211
        $region34: #{tpu_custom_call.1} parent=11 // pred_check_branch
          %459 = sbr.rel (%p457) target = $region36
        $region35: #{tpu_custom_call.1} parent=11 // pred_region
          _
        $region36: #{tpu_custom_call.1} parent=11 // pred_fallthru
          _
        // Predicated region
        $region37: #{tpu_custom_call.1} parent=11 // pred_check
          %p460 = pneg %p232
        $region38: #{tpu_custom_call.1} parent=11 // pred_check_branch
          %462 = sbr.rel (%p460) target = $region40
        $region39: #{tpu_custom_call.1} parent=11 // pred_region
          %464 = vsyncadd [#allocation9], 0
          %s465 = sshll.u32 %s8, 4
          %s466 = int_to_ptr.hbm [resolvable:$true] %s465
          %s467 = sshll.u32 [#allocation10], 4
          %s468 = int_to_ptr.vmem [resolvable:$true] %s467
          %473 = dma.hbm_to_vmem [thread:$0]  %s466, 1024, %s468, [#allocation9], 64, 64, 4
        $region40: #{tpu_custom_call.1} parent=11 // pred_fallthru
          _
        // Predicated region
        $region41: #{tpu_custom_call.1} parent=11 // pred_check
          %p474 = pneg %p253
        $region42: #{tpu_custom_call.1} parent=11 // pred_check_branch
          %476 = sbr.rel (%p474) target = $region44
        $region43: #{tpu_custom_call.1} parent=11 // pred_region
          _
        $region44: #{tpu_custom_call.1} parent=11 // pred_fallthru
          _
        // Predicated region
        $region45: #{tpu_custom_call.1} parent=11 // pred_check
          %p477 = pneg %p274
        $region46: #{tpu_custom_call.1} parent=11 // pred_check_branch
          %479 = sbr.rel (%p477) target = $region48
        $region47: #{tpu_custom_call.1} parent=11 // pred_region
          _
        $region48: #{tpu_custom_call.1} parent=11 // pred_fallthru
          _
        // Predicated region
        $region49: #{tpu_custom_call.1} parent=11 // pred_check
          %p480 = pneg %p295
        $region50: #{tpu_custom_call.1} parent=11 // pred_check_branch
          %482 = sbr.rel (%p480) target = $region52
        $region51: #{tpu_custom_call.1} parent=11 // pred_region
          _
        $region52: #{tpu_custom_call.1} parent=11 // pred_fallthru
          _
        // Predicated region
        $region53: #{tpu_custom_call.1} parent=11 // pred_check
          %p483 = pneg %p316
        $region54: #{tpu_custom_call.1} parent=11 // pred_check_branch
          %485 = sbr.rel (%p483) target = $region56
        $region55: #{tpu_custom_call.1} parent=11 // pred_region
          _
        $region56: #{tpu_custom_call.1} parent=11 // pred_fallthru
          _
        // Predicated region
        $region57: #{tpu_custom_call.1} parent=11 // pred_check
          %p486 = pneg %p337
        $region58: #{tpu_custom_call.1} parent=11 // pred_check_branch
          %488 = sbr.rel (%p486) target = $region60
        $region59: #{tpu_custom_call.1} parent=11 // pred_region
          _
        $region60: #{tpu_custom_call.1} parent=11 // pred_fallthru
          _
        // Predicated region
        $region61: #{tpu_custom_call.1} parent=11 // pred_check
          %p489 = pneg %p358
        $region62: #{tpu_custom_call.1} parent=11 // pred_check_branch
          %491 = sbr.rel (%p489) target = $region64
        $region63: #{tpu_custom_call.1} parent=11 // pred_region
          %493 = vsyncadd [#allocation12], 0
          %s494 = sshll.u32 %s14, 4
          %s495 = int_to_ptr.hbm [resolvable:$true] %s494
          %s496 = sshll.u32 [#allocation11], 4
          %s497 = int_to_ptr.vmem [resolvable:$true] %s496
          %502 = dma.hbm_to_vmem [thread:$0]  %s495, 1024, %s497, [#allocation12], 64, 64, 4
        $region64: #{tpu_custom_call.1} parent=11 // pred_fallthru
          _
        // Predicated region
        $region65: #{tpu_custom_call.1} parent=11 // pred_check
          %p503 = pneg %p379
        $region66: #{tpu_custom_call.1} parent=11 // pred_check_branch
          %505 = sbr.rel (%p503) target = $region68
        $region67: #{tpu_custom_call.1} parent=11 // pred_region
          _
        $region68: #{tpu_custom_call.1} parent=11 // pred_fallthru
          _
      $region12: #{tpu_custom_call.1} parent=5 // pred_fallthru
        _
      %p506 = scmp.lt.s32.totalorder %s33, 2
      // Predicated region
      $region69: #{tpu_custom_call.1} parent=5 // pred_check
        %p507 = pneg %p506
      $region70: #{tpu_custom_call.1} parent=5 // pred_check_branch
        %509 = sbr.rel (%p507) target = $region72
      $region71: #{tpu_custom_call.1} parent=5 // pred_region
        // Predicated region
        $region73: #{tpu_custom_call.1} parent=71 // pred_check
          %p510 = pneg %p53
        $region74: #{tpu_custom_call.1} parent=71 // pred_check_branch
          %512 = sbr.rel (%p510) target = $region76
        $region75: #{tpu_custom_call.1} parent=71 // pred_region
          %s513 = sand.u32 %s43, 1
          %s514 = scalar_lea.sflag [#allocation3], %s513
          %s515 = sand.u32 %s43, 1
          %s516 = smul.addr %s515, 8
          %s517 = scalar_lea.vmem [#allocation2], %s516
          %519 = vsyncadd %s514, 0
          %s520 = smul.addr %s33, 8
          %s521 = scalar_lea.hbm %s0, %s520
          %s523 = sshll.u32 %s521, 4
          %s524 = int_to_ptr.hbm [resolvable:$true] %s523
          %s525 = sshll.u32 %s517, 4
          %s526 = int_to_ptr.vmem [resolvable:$true] %s525
          %528 = dma.hbm_to_vmem [thread:$0]  %s524, 128, %s526, %s514
        $region76: #{tpu_custom_call.1} parent=71 // pred_fallthru
          _
        // Predicated region
        $region77: #{tpu_custom_call.1} parent=71 // pred_check
          %p529 = pneg %p79
        $region78: #{tpu_custom_call.1} parent=71 // pred_check_branch
          %531 = sbr.rel (%p529) target = $region80
        $region79: #{tpu_custom_call.1} parent=71 // pred_region
          %s532 = sand.u32 %s33, 1
          %s533 = scalar_lea.sflag [#allocation6], %s532
          %s534 = sand.u32 %s69, 1
          %s535 = scalar_lea.vmem [#allocation5], %s534
          %537 = vsyncadd %s533, 0
          %s538 = scalar_lea.hbm %s1, %s33
          %s540 = sshll.u32 %s538, 4
          %s541 = int_to_ptr.hbm [resolvable:$true] %s540
          %s542 = sshll.u32 %s535, 4
          %s543 = int_to_ptr.vmem [resolvable:$true] %s542
          %545 = dma.hbm_to_vmem [thread:$0]  %s541, 16, %s543, %s533
        $region80: #{tpu_custom_call.1} parent=71 // pred_fallthru
          _
      $region72: #{tpu_custom_call.1} parent=5 // pred_fallthru
        _
      %p546 = scmp.le.s32.totalorder 1, %s33
      %p547 = scmp.lt.s32.totalorder %s33, 3
      %p548 = pnand %p546, %p547
      %p549 = pneg %p548
      // Predicated region
      $region81: #{tpu_custom_call.1} parent=5 // pred_check
        _
      $region82: #{tpu_custom_call.1} parent=5 // pred_check_branch
        %551 = sbr.rel (%p548) target = $region84
      $region83: #{tpu_custom_call.1} parent=5 // pred_region
        %s552 = ssub.s32 %s33, 1
        %s553 = sand.u32 %s46, 1
        %s554 = scalar_lea.sflag [#allocation3], %s553
        %s555 = sand.u32 %s46, 1
        %s556 = smul.addr %s555, 8
        %s557 = scalar_lea.vmem [#allocation2], %s556
        // Predicated region
        $region85: #{tpu_custom_call.1} parent=83 // pred_check
          %p558 = pneg %p59
        $region86: #{tpu_custom_call.1} parent=83 // pred_check_branch
          %560 = sbr.rel (%p558) target = $region88
        $region87: #{tpu_custom_call.1} parent=83 // pred_region
          %562 = dma.done %s554, 128
        $region88: #{tpu_custom_call.1} parent=83 // pred_fallthru
          _
        %s563 = sand.u32 %s38, 1
        %s564 = scalar_lea.sflag [#allocation6], %s563
        %s565 = sand.u32 %s72, 1
        %s566 = scalar_lea.vmem [#allocation5], %s565
        // Predicated region
        $region89: #{tpu_custom_call.1} parent=83 // pred_check
          %p567 = pneg %p85
        $region90: #{tpu_custom_call.1} parent=83 // pred_check_branch
          %569 = sbr.rel (%p567) target = $region92
        $region91: #{tpu_custom_call.1} parent=83 // pred_region
          %571 = dma.done %s564, 16
        $region92: #{tpu_custom_call.1} parent=83 // pred_fallthru
          _
        // Predicated region
        $region93: #{tpu_custom_call.1} parent=83 // pred_check
          %p572 = pneg %p148
        $region94: #{tpu_custom_call.1} parent=83 // pred_check_branch
          %574 = sbr.rel (%p572) target = $region96
        $region95: #{tpu_custom_call.1} parent=83 // pred_region
          %576 = dma.done [#allocation6], 1024
        $region96: #{tpu_custom_call.1} parent=83 // pred_fallthru
          _
        // Predicated region
        $region97: #{tpu_custom_call.1} parent=83 // pred_check
          %p577 = pneg %p190
        $region98: #{tpu_custom_call.1} parent=83 // pred_check_branch
          %579 = sbr.rel (%p577) target = $region100
        $region99: #{tpu_custom_call.1} parent=83 // pred_region
          %581 = dma.done [#allocation9], 1024
        $region100: #{tpu_custom_call.1} parent=83 // pred_fallthru
          _
        // Predicated region
        $region101: #{tpu_custom_call.1} parent=83 // pred_check
          %p582 = pneg %p232
        $region102: #{tpu_custom_call.1} parent=83 // pred_check_branch
          %584 = sbr.rel (%p582) target = $region104
        $region103: #{tpu_custom_call.1} parent=83 // pred_region
          %586 = dma.done [#allocation9], 1024
        $region104: #{tpu_custom_call.1} parent=83 // pred_fallthru
          _
        // Predicated region
        $region105: #{tpu_custom_call.1} parent=83 // pred_check
          %p587 = pneg %p358
        $region106: #{tpu_custom_call.1} parent=83 // pred_check_branch
          %589 = sbr.rel (%p587) target = $region108
        $region107: #{tpu_custom_call.1} parent=83 // pred_region
          %591 = dma.done [#allocation12], 1024
        $region108: #{tpu_custom_call.1} parent=83 // pred_fallthru
          _
        %s592 = sand.u32 %s46, 1
        %s593 = scalar_lea.sflag [#allocation3], %s592
        %s594 = sand.u32 %s46, 1
        %s595 = smul.addr %s594, 8
        %s596 = scalar_lea.vmem [#allocation2], %s595
        %p597 = pneg %p59
        %p598 = pneg %p56
        %s599 = sand.u32 %s38, 1
        %s600 = scalar_lea.sflag [#allocation6], %s599
        %s601 = sand.u32 %s72, 1
        %s602 = scalar_lea.vmem [#allocation5], %s601
        %p603 = pneg %p85
        %p604 = pneg %p82
        %p605 = pneg %p106
        %p606 = pneg %p103
        %p607 = pneg %p127
        %p608 = pneg %p124
        %p609 = pneg %p148
        %p610 = pneg %p145
        %p611 = pneg %p169
        %p612 = pneg %p166
        %p613 = pneg %p190
        %p614 = pneg %p187
        %p615 = pneg %p211
        %p616 = pneg %p208
        %p617 = pneg %p232
        %p618 = pneg %p229
        %p619 = pneg %p253
        %p620 = pneg %p250
        %p621 = pneg %p274
        %p622 = pneg %p271
        %p623 = pneg %p295
        %p624 = pneg %p292
        %p625 = pneg %p316
        %p626 = pneg %p313
        %p627 = pneg %p337
        %p628 = pneg %p334
        %p629 = pneg %p358
        %p630 = pneg %p355
        %p631 = pneg %p379
        %p632 = pneg %p376
        %p633 = pneg %p405
        %p634 = pneg %p402
        %s635 = sand.u32 %s392, 1
        %s636 = scalar_lea.sflag [#allocation4], %s635
        %s637 = sand.u32 %s392, 1
        %s638 = smul.addr %s637, 8
        %s639 = scalar_lea.vmem [#allocation13], %s638
        %v641 = vld [vmem:[%s557] sm:$0xff]
        %v642 = vld [vmem:[%s2] sm:$0x1]
        %v643 = vld [vmem:[%s3] sm:$0x1]
        %644 = vadd.xlane.f32.xlu0 %v641
        %v645 = vpop.xlane.xlu0 %644
        %v646 = vrcp.pop 128.0
        %v647 = vmul.f32 128.0, %v646
        %v648 = vsub.f32 1.0, %v647
        %v649 = vmul.f32 %v646, %v648
        %v650 = vadd.f32 %v646, %v649
        %vm651 = vweird.f32 %v646
        %v652 = vsel %vm651, %v646, %v650
        %v653 = vmul.f32 %v645, %v652
        %v654 = vsub.f32 %v641, %v653
        %v655 = vmul.f32 %v654, %v654
        %656 = vadd.xlane.f32.xlu0 %v655
        %v657 = vpop.xlane.xlu0 %656
        %v658 = vmul.f32 %v657, %v652
        %v659 = vadd.f32 %v658, 1e-05
        %v660 = vrsqrt.pop %v659
        %v661 = vmul.f32 %v660, %v659
        %v662 = vmul.f32 %v661, %v660
        %v663 = vmul.f32 0.5, %v662
        %v664 = vsub.f32 1.5, %v663
        %v665 = vmul.f32 %v660, %v664
        %vm666 = vweird.f32 %v659
        %vm667 = vweird.f32 %v660
        %vm668 = vmor %vm666, %vm667
        %v669 = vsel %vm668, %v660, %v665
        %v670 = vmul.f32 %v654, %v669
        %v672 = vperm.slane %v642, 0
        %v674 = vmul.f32 %v670, %v672
        %v676 = vperm.slane %v643, 0
        %v678 = vadd.f32 %v674, %v676
        %v679 = vpack.c.bf16 %v678, %v678
        %v680 = vld [vmem:[#allocation7] sm:$0xf]
        %v681 = vld [vmem:[#allocation7 + $0x4] sm:$0xf]
        %v682 = vld [vmem:[#allocation7 + $0x8] sm:$0xf]
        %v683 = vld [vmem:[#allocation7 + $0xc] sm:$0xf]
        %v684 = vld [vmem:[#allocation7 + $0x10] sm:$0xf]
        %v685 = vld [vmem:[#allocation7 + $0x14] sm:$0xf]
        %v686 = vld [vmem:[#allocation7 + $0x18] sm:$0xf]
        %v687 = vld [vmem:[#allocation7 + $0x1c] sm:$0xf]
        %v688 = vld [vmem:[#allocation7 + $0x20] sm:$0xf]
        %v689 = vld [vmem:[#allocation7 + $0x24] sm:$0xf]
        %v690 = vld [vmem:[#allocation7 + $0x28] sm:$0xf]
        %v691 = vld [vmem:[#allocation7 + $0x2c] sm:$0xf]
        %v692 = vld [vmem:[#allocation7 + $0x30] sm:$0xf]
        %v693 = vld [vmem:[#allocation7 + $0x34] sm:$0xf]
        %v694 = vld [vmem:[#allocation7 + $0x38] sm:$0xf]
        %v695 = vld [vmem:[#allocation7 + $0x3c] sm:$0xf]
        %v696 = vld [vmem:[%s5] sm:$0x1]
        %v698 = vperm.slane %v696, 0
        %v716 = vunpack.c.l.b16 %v680
        %v717 = vunpack.c.l.b16 %v681
        %v718 = vunpack.c.l.b16 %v682
        %v719 = vunpack.c.l.b16 %v683
        %v720 = vunpack.c.l.b16 %v684
        %v721 = vunpack.c.l.b16 %v685
        %v722 = vunpack.c.l.b16 %v686
        %v723 = vunpack.c.l.b16 %v687
        %v724 = vunpack.c.l.b16 %v688
        %v725 = vunpack.c.l.b16 %v689
        %v726 = vunpack.c.l.b16 %v690
        %v727 = vunpack.c.l.b16 %v691
        %v728 = vunpack.c.l.b16 %v692
        %v729 = vunpack.c.l.b16 %v693
        %v730 = vunpack.c.l.b16 %v694
        %v731 = vunpack.c.l.b16 %v695
        %v732 = vpack.c.b16 %v717, %v716
        %v733 = vpack.c.b16 %v719, %v718
        %v734 = vpack.c.b16 %v721, %v720
        %v735 = vpack.c.b16 %v723, %v722
        %v736 = vpack.c.b16 %v725, %v724
        %v737 = vpack.c.b16 %v727, %v726
        %v738 = vpack.c.b16 %v729, %v728
        %v739 = vpack.c.b16 %v731, %v730
        %748 = vmatpush.bf16.msra.mxu0 %v739
        %749 = vmatpush.bf16.msra.mxu0 %v738
        %750 = vmatpush.bf16.msra.mxu0 %v737
        %751 = vmatpush.bf16.msra.mxu0 %v736
        %752 = vmatpush.bf16.msra.mxu0 %v735
        %753 = vmatpush.bf16.msra.mxu0 %v734
        %754 = vmatpush.bf16.msra.mxu0 %v733
        %755 = vmatpush.bf16.msra.mxu0 %v732
        %756 = vmatmul.bf16.gmra.mxu0 %v679
        %v757 = vpop.f32.mrf.mxu0
        %v758 = vadd.f32 %v698, %v757
        %v759 = vpop.f32.mrf.mxu0
        %760 = vdwg.mxu0
        %v761 = vld [vmem:[%s10] sm:$0x1]
        %v762 = vmul.f32 %v761, 0.125
        %v763 = vld [vmem:[%s11] sm:$0x1]
        %v764 = vmul.f32 %v763, 0.125
        %765 = vadd.xlane.f32.xlu0 %v758
        %v766 = vpop.xlane.xlu0 %765
        %v767 = vmul.f32 %v766, %v652
        %v768 = vsub.f32 %v758, %v767
        %v769 = vmul.f32 %v768, %v768
        %770 = vadd.xlane.f32.xlu0 %v769
        %v771 = vpop.xlane.xlu0 %770
        %v772 = vmul.f32 %v771, %v652
        %v773 = vadd.f32 %v772, 1e-05
        %v774 = vrsqrt.pop %v773
        %v775 = vmul.f32 %v774, %v773
        %v776 = vmul.f32 %v775, %v774
        %v777 = vmul.f32 0.5, %v776
        %v778 = vsub.f32 1.5, %v777
        %v779 = vmul.f32 %v774, %v778
        %vm780 = vweird.f32 %v773
        %vm781 = vweird.f32 %v774
        %vm782 = vmor %vm780, %vm781
        %v783 = vsel %vm782, %v774, %v779
        %v784 = vmul.f32 %v768, %v783
        %v786 = vperm.slane %v762, 0
        %v788 = vmul.f32 %v784, %v786
        %v790 = vperm.slane %v764, 0
        %v792 = vadd.f32 %v788, %v790
        %v793 = vld [vmem:[#allocation8] sm:$0xf]
        %v794 = vld [vmem:[#allocation8 + $0x4] sm:$0xf]
        %v795 = vld [vmem:[#allocation8 + $0x8] sm:$0xf]
        %v796 = vld [vmem:[#allocation8 + $0xc] sm:$0xf]
        %v797 = vld [vmem:[#allocation8 + $0x10] sm:$0xf]
        %v798 = vld [vmem:[#allocation8 + $0x14] sm:$0xf]
        %v799 = vld [vmem:[#allocation8 + $0x18] sm:$0xf]
        %v800 = vld [vmem:[#allocation8 + $0x1c] sm:$0xf]
        %v801 = vld [vmem:[#allocation8 + $0x20] sm:$0xf]
        %v802 = vld [vmem:[#allocation8 + $0x24] sm:$0xf]
        %v803 = vld [vmem:[#allocation8 + $0x28] sm:$0xf]
        %v804 = vld [vmem:[#allocation8 + $0x2c] sm:$0xf]
        %v805 = vld [vmem:[#allocation8 + $0x30] sm:$0xf]
        %v806 = vld [vmem:[#allocation8 + $0x34] sm:$0xf]
        %v807 = vld [vmem:[#allocation8 + $0x38] sm:$0xf]
        %v808 = vld [vmem:[#allocation8 + $0x3c] sm:$0xf]
        %v809 = vld [vmem:[%s7] sm:$0x1]
        %v811 = vperm.slane %v809, 0
        %v829 = vunpack.c.l.b16 %v793
        %v830 = vunpack.c.l.b16 %v794
        %v831 = vunpack.c.l.b16 %v795
        %v832 = vunpack.c.l.b16 %v796
        %v833 = vunpack.c.l.b16 %v797
        %v834 = vunpack.c.l.b16 %v798
        %v835 = vunpack.c.l.b16 %v799
        %v836 = vunpack.c.l.b16 %v800
        %v837 = vunpack.c.l.b16 %v801
        %v838 = vunpack.c.l.b16 %v802
        %v839 = vunpack.c.l.b16 %v803
        %v840 = vunpack.c.l.b16 %v804
        %v841 = vunpack.c.l.b16 %v805
        %v842 = vunpack.c.l.b16 %v806
        %v843 = vunpack.c.l.b16 %v807
        %v844 = vunpack.c.l.b16 %v808
        %v845 = vpack.c.b16 %v830, %v829
        %v846 = vpack.c.b16 %v832, %v831
        %v847 = vpack.c.b16 %v834, %v833
        %v848 = vpack.c.b16 %v836, %v835
        %v849 = vpack.c.b16 %v838, %v837
        %v850 = vpack.c.b16 %v840, %v839
        %v851 = vpack.c.b16 %v842, %v841
        %v852 = vpack.c.b16 %v844, %v843
        %861 = vmatpush.bf16.msra.mxu0 %v852
        %862 = vmatpush.bf16.msra.mxu0 %v851
        %863 = vmatpush.bf16.msra.mxu0 %v850
        %864 = vmatpush.bf16.msra.mxu0 %v849
        %865 = vmatpush.bf16.msra.mxu0 %v848
        %866 = vmatpush.bf16.msra.mxu0 %v847
        %867 = vmatpush.bf16.msra.mxu0 %v846
        %868 = vmatpush.bf16.msra.mxu0 %v845
        %869 = vmatmul.bf16.gmra.mxu0 %v679
        %v870 = vpop.f32.mrf.mxu0
        %v871 = vadd.f32 %v811, %v870
        %v872 = vpop.f32.mrf.mxu0
        %873 = vdwg.mxu0
        %v874 = vld [vmem:[%s12] sm:$0x1]
        %v875 = vld [vmem:[%s13] sm:$0x1]
        %876 = vadd.xlane.f32.xlu0 %v871
        %v877 = vpop.xlane.xlu0 %876
        %v878 = vmul.f32 %v877, %v652
        %v879 = vsub.f32 %v871, %v878
        %v880 = vmul.f32 %v879, %v879
        %881 = vadd.xlane.f32.xlu0 %v880
        %v882 = vpop.xlane.xlu0 %881
        %v883 = vmul.f32 %v882, %v652
        %v884 = vadd.f32 %v883, 1e-05
        %v885 = vrsqrt.pop %v884
        %v886 = vmul.f32 %v885, %v884
        %v887 = vmul.f32 %v886, %v885
        %v888 = vmul.f32 0.5, %v887
        %v889 = vsub.f32 1.5, %v888
        %v890 = vmul.f32 %v885, %v889
        %vm891 = vweird.f32 %v884
        %vm892 = vweird.f32 %v885
        %vm893 = vmor %vm891, %vm892
        %v894 = vsel %vm893, %v885, %v890
        %v895 = vmul.f32 %v879, %v894
        %v897 = vperm.slane %v874, 0
        %v899 = vmul.f32 %v895, %v897
        %v901 = vperm.slane %v875, 0
        %v903 = vadd.f32 %v899, %v901
        %v904 = vld [vmem:[#allocation10] sm:$0xf]
        %v905 = vld [vmem:[#allocation10 + $0x4] sm:$0xf]
        %v906 = vld [vmem:[#allocation10 + $0x8] sm:$0xf]
        %v907 = vld [vmem:[#allocation10 + $0xc] sm:$0xf]
        %v908 = vld [vmem:[#allocation10 + $0x10] sm:$0xf]
        %v909 = vld [vmem:[#allocation10 + $0x14] sm:$0xf]
        %v910 = vld [vmem:[#allocation10 + $0x18] sm:$0xf]
        %v911 = vld [vmem:[#allocation10 + $0x1c] sm:$0xf]
        %v912 = vld [vmem:[#allocation10 + $0x20] sm:$0xf]
        %v913 = vld [vmem:[#allocation10 + $0x24] sm:$0xf]
        %v914 = vld [vmem:[#allocation10 + $0x28] sm:$0xf]
        %v915 = vld [vmem:[#allocation10 + $0x2c] sm:$0xf]
        %v916 = vld [vmem:[#allocation10 + $0x30] sm:$0xf]
        %v917 = vld [vmem:[#allocation10 + $0x34] sm:$0xf]
        %v918 = vld [vmem:[#allocation10 + $0x38] sm:$0xf]
        %v919 = vld [vmem:[#allocation10 + $0x3c] sm:$0xf]
        %v920 = vld [vmem:[%s9] sm:$0x1]
        %v922 = vperm.slane %v920, 0
        %v940 = vunpack.c.l.b16 %v904
        %v941 = vunpack.c.l.b16 %v905
        %v942 = vunpack.c.l.b16 %v906
        %v943 = vunpack.c.l.b16 %v907
        %v944 = vunpack.c.l.b16 %v908
        %v945 = vunpack.c.l.b16 %v909
        %v946 = vunpack.c.l.b16 %v910
        %v947 = vunpack.c.l.b16 %v911
        %v948 = vunpack.c.l.b16 %v912
        %v949 = vunpack.c.l.b16 %v913
        %v950 = vunpack.c.l.b16 %v914
        %v951 = vunpack.c.l.b16 %v915
        %v952 = vunpack.c.l.b16 %v916
        %v953 = vunpack.c.l.b16 %v917
        %v954 = vunpack.c.l.b16 %v918
        %v955 = vunpack.c.l.b16 %v919
        %v956 = vpack.c.b16 %v941, %v940
        %v957 = vpack.c.b16 %v943, %v942
        %v958 = vpack.c.b16 %v945, %v944
        %v959 = vpack.c.b16 %v947, %v946
        %v960 = vpack.c.b16 %v949, %v948
        %v961 = vpack.c.b16 %v951, %v950
        %v962 = vpack.c.b16 %v953, %v952
        %v963 = vpack.c.b16 %v955, %v954
        %972 = vmatpush.bf16.msra.mxu0 %v963
        %973 = vmatpush.bf16.msra.mxu0 %v962
        %974 = vmatpush.bf16.msra.mxu0 %v961
        %975 = vmatpush.bf16.msra.mxu0 %v960
        %976 = vmatpush.bf16.msra.mxu0 %v959
        %977 = vmatpush.bf16.msra.mxu0 %v958
        %978 = vmatpush.bf16.msra.mxu0 %v957
        %979 = vmatpush.bf16.msra.mxu0 %v956
        %980 = vmatmul.bf16.gmra.mxu0 %v679
        %v981 = vpop.f32.mrf.mxu0
        %v982 = vadd.f32 %v922, %v981
        %v983 = vpop.f32.mrf.mxu0
        %984 = vdwg.mxu0
        %v985 = vld [vmem:[#allocation11] sm:$0xf]
        %v986 = vld [vmem:[#allocation11 + $0x4] sm:$0xf]
        %v987 = vld [vmem:[#allocation11 + $0x8] sm:$0xf]
        %v988 = vld [vmem:[#allocation11 + $0xc] sm:$0xf]
        %v989 = vld [vmem:[#allocation11 + $0x10] sm:$0xf]
        %v990 = vld [vmem:[#allocation11 + $0x14] sm:$0xf]
        %v991 = vld [vmem:[#allocation11 + $0x18] sm:$0xf]
        %v992 = vld [vmem:[#allocation11 + $0x1c] sm:$0xf]
        %v993 = vld [vmem:[#allocation11 + $0x20] sm:$0xf]
        %v994 = vld [vmem:[#allocation11 + $0x24] sm:$0xf]
        %v995 = vld [vmem:[#allocation11 + $0x28] sm:$0xf]
        %v996 = vld [vmem:[#allocation11 + $0x2c] sm:$0xf]
        %v997 = vld [vmem:[#allocation11 + $0x30] sm:$0xf]
        %v998 = vld [vmem:[#allocation11 + $0x34] sm:$0xf]
        %v999 = vld [vmem:[#allocation11 + $0x38] sm:$0xf]
        %v1000 = vld [vmem:[#allocation11 + $0x3c] sm:$0xf]
        %v1001 = vld [vmem:[%s15] sm:$0x1]
        %v1002 = vlaneseq
        %v1003 = vshrl.u32 %v1002, 7
        %v1004 = vlaneseq
        %v1005 = vand.u32 %v1004, 127
        %vm1006 = vcmp.eq.s32.totalorder %v1003, %v1005
        %v1007 = vld [vmem:[%s566] sm:$0x1]
        %vm1008 = vcmp.gt.f32.partialorder %v1007, 0.5
        %1009 = vxpose.xlu0.b32.start [1/16] %v1007, 128
        %1010 = vxpose.xlu0.b32.cont [2/16] 0.0, 128
        %1011 = vxpose.xlu0.b32.cont [3/16] 0.0, 128
        %1012 = vxpose.xlu0.b32.cont [4/16] 0.0, 128
        %1013 = vxpose.xlu0.b32.cont [5/16] 0.0, 128
        %1014 = vxpose.xlu0.b32.cont [6/16] 0.0, 128
        %1015 = vxpose.xlu0.b32.cont [7/16] 0.0, 128
        %1016 = vxpose.xlu0.b32.cont [8/16] 0.0, 128
        %1017 = vxpose.xlu0.b32.cont [9/16] 0.0, 128
        %1018 = vxpose.xlu0.b32.cont [10/16] 0.0, 128
        %1019 = vxpose.xlu0.b32.cont [11/16] 0.0, 128
        %1020 = vxpose.xlu0.b32.cont [12/16] 0.0, 128
        %1021 = vxpose.xlu0.b32.cont [13/16] 0.0, 128
        %1022 = vxpose.xlu0.b32.cont [14/16] 0.0, 128
        %1023 = vxpose.xlu0.b32.cont [15/16] 0.0, 128
        %1024 = vxpose.xlu0.b32.end [16/16] 0.0, 128
        %v1025 = vpop.trf.xlu0
        %v1026 = vpop.trf.xlu0
        %v1027 = vpop.trf.xlu0
        %v1028 = vpop.trf.xlu0
        %v1029 = vpop.trf.xlu0
        %v1030 = vpop.trf.xlu0
        %v1031 = vpop.trf.xlu0
        %v1032 = vpop.trf.xlu0
        %v1033 = vpop.trf.xlu0
        %v1034 = vpop.trf.xlu0
        %v1035 = vpop.trf.xlu0
        %v1036 = vpop.trf.xlu0
        %v1037 = vpop.trf.xlu0
        %v1038 = vpop.trf.xlu0
        %v1039 = vpop.trf.xlu0
        %v1040 = vpop.trf.xlu0
        %vm1041 = vcmp.gt.f32.partialorder %v1025, 0.5
        %v1042 = vsel %vm1041, 1, 0
        %1043 = vset.pattern.permute.xlu0 0
        %1044 = vperm.xlu0 %1043, %v1042
        %v1045 = vpop.permute.xlu0 %1044
        %vm1046 = vcmp.eq.s32.totalorder %v1045, 1
        %v1047 = vsel %vm1008, 1, 0
        %v1048 = vperm.slane %v1047, 0
        %vm1049 = vcmp.eq.s32.totalorder %v1048, 1
        %vm1050 = vmand %vm1046, %vm1049
        %vm1051 = vmor %vm1050, %vm1006
        %vm1052 = vcmask 523264
        %v1054 = vsel %vm1052, %v792, 0
        %v1057 = vsel %vm1052, %v903, 0
        %1059 = vmatpush.xpose.msra.mxu0 0.0
        %1060 = vmatpush.xpose.msra.mxu0 0.0
        %1061 = vmatpush.xpose.msra.mxu0 0.0
        %1062 = vmatpush.xpose.msra.mxu0 0.0
        %1063 = vmatpush.xpose.msra.mxu0 0.0
        %1064 = vmatpush.xpose.msra.mxu0 0.0
        %1065 = vmatpush.xpose.msra.mxu0 0.0
        %1066 = vmatpush.xpose.msra.mxu0 0.0
        %1067 = vmatpush.xpose.msra.mxu0 0.0
        %1068 = vmatpush.xpose.msra.mxu0 0.0
        %1069 = vmatpush.xpose.msra.mxu0 0.0
        %1070 = vmatpush.xpose.msra.mxu0 0.0
        %1071 = vmatpush.xpose.msra.mxu0 0.0
        %1072 = vmatpush.xpose.msra.mxu0 0.0
        %1073 = vmatpush.xpose.msra.mxu0 0.0
        %1074 = vmatpush.xpose.msra.mxu0 %v1057
        %1075 = vmatmul.f32.gmra.mxu0 %v1054
        %v1076 = vpop.f32.mrf.mxu0
        %v1077 = vadd.f32 0.0, %v1076
        %1078 = vdwg.mxu0
        %v1079 = vsel %vm1051, %v1077, -1e+30
        %vm1080 = vcmask 64512
        %v1081 = vsel %vm1080, %v1079, -inf
        %1082 = vmax.xlane.f32.xlu0 %v1081
        %v1083 = vpop.xlane.xlu0 %1082
        %v1084 = vsub.f32 %v1079, %v1083
        %v1085 = vmul.f32 %v1084, 1.442695
        %v1086 = vpow.pop %v1085
        %v1087 = vsel %vm1080, %v1086, 0.0
        %1088 = vadd.xlane.f32.xlu0 %v1087
        %v1089 = vpop.xlane.xlu0 %1088
        %v1090 = vrcp.pop %v1089
        %v1091 = vmul.f32 %v1086, %v1090
        %v1093 = vsel %vm1080, %v1091, 0
        %1095 = vmatpush.msra.mxu0 0.0
        %1096 = vmatpush.msra.mxu0 0.0
        %1097 = vmatpush.msra.mxu0 0.0
        %1098 = vmatpush.msra.mxu0 0.0
        %1099 = vmatpush.msra.mxu0 0.0
        %1100 = vmatpush.msra.mxu0 0.0
        %1101 = vmatpush.msra.mxu0 0.0
        %1102 = vmatpush.msra.mxu0 0.0
        %1103 = vmatpush.msra.mxu0 0.0
        %1104 = vmatpush.msra.mxu0 0.0
        %1105 = vmatpush.msra.mxu0 0.0
        %1106 = vmatpush.msra.mxu0 0.0
        %1107 = vmatpush.msra.mxu0 0.0
        %1108 = vmatpush.msra.mxu0 0.0
        %1109 = vmatpush.msra.mxu0 0.0
        %1110 = vmatpush.msra.mxu0 %v982
        %1111 = vmatmul.f32.gmra.mxu0 %v1093
        %v1112 = vpop.f32.mrf.mxu0
        %v1113 = vadd.f32 0.0, %v1112
        %1114 = vdwg.mxu0
        %v1115 = vpack.c.bf16 %v1113, %v1113
        %1116 = vrot.lane.b32.xlu0 %v792, 64
        %v1117 = vpop.permute.xlu0 %1116
        %1118 = vrot.lane.b32.xlu0 %v903, 64
        %v1119 = vpop.permute.xlu0 %1118
        %v1120 = vsel %vm1052, %v1117, 0
        %v1122 = vsel %vm1052, %v1119, 0
        %1124 = vmatpush.xpose.msra.mxu0 0.0
        %1125 = vmatpush.xpose.msra.mxu0 0.0
        %1126 = vmatpush.xpose.msra.mxu0 0.0
        %1127 = vmatpush.xpose.msra.mxu0 0.0
        %1128 = vmatpush.xpose.msra.mxu0 0.0
        %1129 = vmatpush.xpose.msra.mxu0 0.0
        %1130 = vmatpush.xpose.msra.mxu0 0.0
        %1131 = vmatpush.xpose.msra.mxu0 0.0
        %1132 = vmatpush.xpose.msra.mxu0 0.0
        %1133 = vmatpush.xpose.msra.mxu0 0.0
        %1134 = vmatpush.xpose.msra.mxu0 0.0
        %1135 = vmatpush.xpose.msra.mxu0 0.0
        %1136 = vmatpush.xpose.msra.mxu0 0.0
        %1137 = vmatpush.xpose.msra.mxu0 0.0
        %1138 = vmatpush.xpose.msra.mxu0 0.0
        %1139 = vmatpush.xpose.msra.mxu0 %v1122
        %1140 = vmatmul.f32.gmra.mxu0 %v1120
        %v1141 = vpop.f32.mrf.mxu0
        %v1142 = vadd.f32 0.0, %v1141
        %1143 = vdwg.mxu0
        %v1144 = vsel %vm1051, %v1142, -1e+30
        %v1145 = vsel %vm1080, %v1144, -inf
        %1146 = vmax.xlane.f32.xlu0 %v1145
        %v1147 = vpop.xlane.xlu0 %1146
        %v1148 = vsub.f32 %v1144, %v1147
        %v1149 = vmul.f32 %v1148, 1.442695
        %v1150 = vpow.pop %v1149
        %v1151 = vsel %vm1080, %v1150, 0.0
        %1152 = vadd.xlane.f32.xlu0 %v1151
        %v1153 = vpop.xlane.xlu0 %1152
        %v1154 = vrcp.pop %v1153
        %v1155 = vmul.f32 %v1150, %v1154
        %1157 = vrot.lane.b32.xlu0 %v982, 64
        %v1158 = vpop.permute.xlu0 %1157
        %v1161 = vsel %vm1080, %v1155, 0
        %1163 = vmatpush.msra.mxu0 0.0
        %1164 = vmatpush.msra.mxu0 0.0
        %1165 = vmatpush.msra.mxu0 0.0
        %1166 = vmatpush.msra.mxu0 0.0
        %1167 = vmatpush.msra.mxu0 0.0
        %1168 = vmatpush.msra.mxu0 0.0
        %1169 = vmatpush.msra.mxu0 0.0
        %1170 = vmatpush.msra.mxu0 0.0
        %1171 = vmatpush.msra.mxu0 0.0
        %1172 = vmatpush.msra.mxu0 0.0
        %1173 = vmatpush.msra.mxu0 0.0
        %1174 = vmatpush.msra.mxu0 0.0
        %1175 = vmatpush.msra.mxu0 0.0
        %1176 = vmatpush.msra.mxu0 0.0
        %1177 = vmatpush.msra.mxu0 0.0
        %1178 = vmatpush.msra.mxu0 %v1158
        %1179 = vmatmul.f32.gmra.mxu0 %v1161
        %v1180 = vpop.f32.mrf.mxu0
        %v1181 = vadd.f32 0.0, %v1180
        %1182 = vdwg.mxu0
        %v1183 = vpack.c.bf16 %v1181, %v1181
        %v1192 = vunpack.c.l.b16 %v993
        %v1193 = vunpack.c.l.b16 %v994
        %v1194 = vunpack.c.l.b16 %v995
        %v1195 = vunpack.c.l.b16 %v996
        %v1196 = vunpack.c.l.b16 %v997
        %v1197 = vunpack.c.l.b16 %v998
        %v1198 = vunpack.c.l.b16 %v999
        %v1199 = vunpack.c.l.b16 %v1000
        %v1200 = vpack.c.b16 %v1193, %v1192
        %v1201 = vpack.c.b16 %v1195, %v1194
        %v1202 = vpack.c.b16 %v1197, %v1196
        %v1203 = vpack.c.b16 %v1199, %v1198
        %v1209 = vsel %vm1052, %v1183, 0
        %1211 = vmatpush.bf16.msra.mxu0 0
        %1212 = vmatpush.bf16.msra.mxu0 0
        %1213 = vmatpush.bf16.msra.mxu0 0
        %1214 = vmatpush.bf16.msra.mxu0 0
        %1215 = vmatpush.bf16.msra.mxu0 %v1203
        %1216 = vmatpush.bf16.msra.mxu0 %v1202
        %1217 = vmatpush.bf16.msra.mxu0 %v1201
        %1218 = vmatpush.bf16.msra.mxu0 %v1200
        %1219 = vmatmul.bf16.gmra.mxu0 %v1209
        %v1220 = vpop.f32.mrf.mxu0
        %v1221 = vadd.f32 0.0, %v1220
        %v1222 = vpop.f32.mrf.mxu0
        %1223 = vdwg.mxu0
        %v1232 = vunpack.c.l.b16 %v985
        %v1233 = vunpack.c.l.b16 %v986
        %v1234 = vunpack.c.l.b16 %v987
        %v1235 = vunpack.c.l.b16 %v988
        %v1236 = vunpack.c.l.b16 %v989
        %v1237 = vunpack.c.l.b16 %v990
        %v1238 = vunpack.c.l.b16 %v991
        %v1239 = vunpack.c.l.b16 %v992
        %v1240 = vpack.c.b16 %v1233, %v1232
        %v1241 = vpack.c.b16 %v1235, %v1234
        %v1242 = vpack.c.b16 %v1237, %v1236
        %v1243 = vpack.c.b16 %v1239, %v1238
        %v1249 = vsel %vm1052, %v1115, 0
        %1251 = vmatpush.bf16.msra.mxu0 0
        %1252 = vmatpush.bf16.msra.mxu0 0
        %1253 = vmatpush.bf16.msra.mxu0 0
        %1254 = vmatpush.bf16.msra.mxu0 0
        %1255 = vmatpush.bf16.msra.mxu0 %v1243
        %1256 = vmatpush.bf16.msra.mxu0 %v1242
        %1257 = vmatpush.bf16.msra.mxu0 %v1241
        %1258 = vmatpush.bf16.msra.mxu0 %v1240
        %1259 = vmatmul.bf16.gmra.mxu0 %v1249
        %v1260 = vpop.f32.mrf.mxu0
        %v1261 = vadd.f32 %v1221, %v1260
        %v1262 = vpop.f32.mrf.mxu0
        %1263 = vdwg.mxu0
        %v1265 = vperm.slane %v1001, 0
        %v1267 = vadd.f32 %v1261, %v1265
        %1268 = vst [vmem:[%s639] sm:$0xff] %v1267
        %s1269 = sand.u32 %s392, 1
        %s1270 = scalar_lea.sflag [#allocation4], %s1269
        %s1271 = sand.u32 %s392, 1
        %s1272 = smul.addr %s1271, 8
        %s1273 = scalar_lea.vmem [#allocation13], %s1272
        // Predicated region
        $region109: #{tpu_custom_call.1} parent=83 // pred_check
          %p1274 = pneg %p402
        $region110: #{tpu_custom_call.1} parent=83 // pred_check_branch
          %1276 = sbr.rel (%p1274) target = $region112
        $region111: #{tpu_custom_call.1} parent=83 // pred_region
          %1278 = vsyncadd %s1270, 0
          %s1279 = smul.addr %s38, 8
          %s1280 = scalar_lea.hbm %s16, %s1279
          %s1282 = sshll.u32 %s1273, 4
          %s1283 = int_to_ptr.vmem [resolvable:$true] %s1282
          %s1284 = sshll.u32 %s1280, 4
          %s1285 = int_to_ptr.hbm [resolvable:$true] %s1284
          %1287 = dma.vmem_to_hbm [thread:$0]  %s1283, 128, %s1285, %s1270
        $region112: #{tpu_custom_call.1} parent=83 // pred_fallthru
          _
      $region84: #{tpu_custom_call.1} parent=5 // pred_fallthru
        _
      %p1288 = scmp.le.s32.totalorder 2, %s33
      // Predicated region
      $region113: #{tpu_custom_call.1} parent=5 // pred_check
        %p1289 = pneg %p1288
      $region114: #{tpu_custom_call.1} parent=5 // pred_check_branch
        %1291 = sbr.rel (%p1289) target = $region116
      $region115: #{tpu_custom_call.1} parent=5 // pred_region
        %s1292 = ssub.s32 %s33, 2
        // Predicated region
        $region117: #{tpu_custom_call.1} parent=115 // pred_check
          %p1293 = pneg %p408
        $region118: #{tpu_custom_call.1} parent=115 // pred_check_branch
          %1295 = sbr.rel (%p1293) target = $region120
        $region119: #{tpu_custom_call.1} parent=115 // pred_region
          %s1296 = sand.u32 %s393, 1
          %s1297 = scalar_lea.sflag [#allocation4], %s1296
          %s1298 = sand.u32 %s393, 1
          %s1299 = smul.addr %s1298, 8
          %s1300 = scalar_lea.vmem [#allocation13], %s1299
          %1302 = dma.done %s1297, 128
        $region120: #{tpu_custom_call.1} parent=115 // pred_fallthru
          _
      $region116: #{tpu_custom_call.1} parent=5 // pred_fallthru
        _
    $region6: #{tpu_custom_call.1} parent=1 // loop_footer
      %s37 = sadd.s32 1, %s33
    $region7: #{tpu_custom_call.1} parent=1 // loop_footer_branch
      %32 = sbr.rel target = $region3
    $region8: #{tpu_custom_call.1} parent=1 // loop_exit
      _
    %1303 = vsyncpa [#allocation3], 1
    %s1304 = scalar_lea.sflag [#allocation3], 1
    %1305 = vsyncpa %s1304, 1
    %1306 = vsyncpa [#allocation6], 1
    %s1307 = scalar_lea.sflag [#allocation6], 1
    %1308 = vsyncpa %s1307, 1
    %1309 = vsyncpa [#allocation9], 1
    %1310 = vsyncpa [#allocation12], 1
    %1311 = vsyncpa [#allocation4], 1
    %s1312 = scalar_lea.sflag [#allocation4], 1
    %1313 = vsyncpa %s1312, 1

</llo_original>
